<compile_context>
chip_gen: v6e
topology: v6e:2x2x1
jax: 0.10.0
libtpu: 0.0.40
codegen_flags: <defaults>
</compile_context>

<pallas_src>
import functools
import math

import jax
import jax.numpy as jnp
import numpy as np
from jax.experimental import pallas as pl
from jax.experimental.pallas import tpu as pltpu


def _round_up(x: int, m: int) -> int:
    return -(-x // m) * m


# --------------------------------------------------------------------------- #
# One-time probe: verify the strided-rotate convention used by the skew.
# --------------------------------------------------------------------------- #
@functools.lru_cache(maxsize=None)
def _strided_roll_ok() -> bool:
    """True iff pltpu.roll(x, shift, axis=1, stride=1, stride_axis=0) rotates row i by
    (shift + i) in the np.roll direction on this backend."""
    rows, width = 8, 128
    shift = width - 2 * rows + 1          # same formula the attention kernel uses

    def probe(x_ref, o_ref):
        o_ref[...] = pltpu.roll(x_ref[...], shift, 1, stride=1, stride_axis=0)

    x = np.arange(rows * width, dtype=np.float32).reshape(rows, width)
    try:
        got = pl.pallas_call(
            probe, out_shape=jax.ShapeDtypeStruct((rows, width), jnp.float32)
        )(jnp.asarray(x))
        got = np.asarray(jax.block_until_ready(got))
    except Exception:                      # noqa: BLE001 - any failure -> gather fallback
        return False
    want = np.stack([np.roll(x[i], shift + i) for i in range(rows)])
    return bool(np.array_equal(got, want))


# --------------------------------------------------------------------------- #
# Kernel: one batch element per grid step, heads fused for the projection.
# --------------------------------------------------------------------------- #
def _mhsa_kernel(*refs, d_model, num_heads, head_dim, shared_x, with_attn, use_roll):
    n_x = 1 if shared_x else 3
    x_refs = refs[:n_x]
    w_ref, b_ref, er_ref = refs[n_x:n_x + 3]
    out_ref = refs[n_x + 3]
    attn_ref = refs[n_x + 4] if with_attn else None

    D = d_model
    hd = head_dim
    S = x_refs[0].shape[1]
    L_pad = er_ref.shape[1]
    f32 = jnp.float32

    # ---- fused QKV projection (1/sqrt(hd) already folded into Wq / bq) ---------
    if shared_x:
        x = x_refs[0][0]                                                    # (S, D)
        qkv = jnp.dot(x, w_ref[...], preferred_element_type=f32) + b_ref[...]
        q, k, v = qkv[:, :D], qkv[:, D:2 * D], qkv[:, 2 * D:]
    else:
        xq = x_refs[0][0]
        xk = x_refs[1][0]
        xv = x_refs[2][0]
        q = jnp.dot(xq, w_ref[:, :D], preferred_element_type=f32) + b_ref[:, :D]
        k = jnp.dot(xk, w_ref[:, D:2 * D], preferred_element_type=f32) + b_ref[:, D:2 * D]
        v = jnp.dot(xv, w_ref[:, 2 * D:], preferred_element_type=f32) + b_ref[:, 2 * D:]

    roll_shift = L_pad - 2 * S + 1        # row i is rotated by roll_shift + i
    out_cols = []
    for h in range(num_heads):            # static unroll over heads
        lo = h * hd
        qh = q[:, lo:lo + hd]             # (S, hd)
        kh = k[:, lo:lo + hd]
        vh = v[:, lo:lo + hd]

        # One MXU pass for both score terms: q contracted against concat([Er_h, K_h]).
        rhs = jnp.concatenate([er_ref[h], kh], axis=0)                      # (L_pad+S, hd)
        scores_all = jax.lax.dot_general(
            qh, rhs, dimension_numbers=(((1,), (1,)), ((), ())),
            preferred_element_type=f32)                                     # (S, L_pad+S)
        qer = scores_all[:, :L_pad]       # q @ Er_h^T   (relative-position scores)
        qk = scores_all[:, L_pad:]        # q @ K_h^T    (content scores)

        # skew(): Srel[i, j] = QEr[i, j - i + S - 1]
        if use_roll:
            rolled = pltpu.roll(qer, roll_shift, 1, stride=1, stride_axis=0)
            srel = rolled[:, L_pad - S:]
        else:
            rows = jax.lax.broadcasted_iota(jnp.int32, (S, S), 0)
            cols = jax.lax.broadcasted_iota(jnp.int32, (S, S), 1)
            srel = jnp.take_along_axis(qer, cols - rows + (S - 1), axis=1)

        scores = qk + srel

        # Numerically stable softmax in f32; divide on the EUP (approx reciprocal).
        m = jnp.max(scores, axis=-1, keepdims=True)
        e = jnp.exp(scores - m)
        denom = jnp.sum(e, axis=-1, keepdims=True)
        attn = e * pl.reciprocal(denom, approx=True)

        out_cols.append(jnp.dot(attn, vh, preferred_element_type=f32))     # (S, hd)
        if attn_ref is not None:
            attn_ref[0, h] = attn.astype(attn_ref.dtype)                    # lane-dense (S, S)

    # Single lane-dense (S, D) store instead of H masked partial column stores.
    out_ref[0] = jnp.concatenate(out_cols, axis=-1).astype(out_ref.dtype)


# --------------------------------------------------------------------------- #
# Wrapper: parameter fusion, Er slicing/padding, VMEM budget, pallas_call.
# --------------------------------------------------------------------------- #
def _vmem_limit_bytes(S, D, H, L_pad, shared, with_attn):
    hd = D // H
    n_x = 1 if shared else 3
    words = 0
    words += 2 * n_x * S * D              # double-buffered activation blocks
    words += 2 * (3 * D * D + 3 * D)      # fused weight + bias blocks
    words += 2 * H * L_pad * hd           # Er table
    words += 2 * S * D                    # output block
    if with_attn:
        words += 2 * H * S * S            # attention-probability output block
    words += 3 * S * D + 4 * S * (L_pad + S) + 2 * S * D   # in-kernel temporaries
    est = words * 4
    # 2x headroom for compiler scratch, capped below v7x's 64 MiB physical VMEM.
    return int(min(48 * 1024 * 1024, max(32 * 1024 * 1024, 2 * est)))


def mhsa_relpos(query, key, value, params, *, num_heads, max_len, return_attn=True):
    """Forward pass of the torch module (dropout p=0 is the identity).

    Returns (out, attn); attn is None when return_attn=False.
    """
    bs, S, D = query.shape
    H = num_heads
    hd = D // H
    assert hd * H == D, "embed_dim must be divisible by num_heads"
    L = 2 * S - 1
    L_pad = _round_up(L, 128)
    f32 = jnp.float32

    scale = 1.0 / math.sqrt(hd)           # folded into Wq / bq once on the host

    # torch nn.Linear: y = x @ W^T + b.  Concatenate into one (D, 3D) RHS.
    w_fused = jnp.concatenate(
        [params["Wq"].T * scale, params["Wk"].T, params["Wv"].T], axis=1).astype(f32)
    b_fused = jnp.concatenate(
        [params["bq"] * scale, params["bk"], params["bv"]]).reshape(1, 3 * D).astype(f32)

    # Er slicing exactly as in the torch forward; kept untransposed as (H, L, hd) and
    # zero-padded to a lane-aligned relative-position axis.
    Er = params["Er"]
    Er_t = Er[:, max(0, max_len - S): min(2 * max_len - 1, max_len + S - 1), :]
    if S > max_len:
        pad = S - max_len
        Er_t = jnp.concatenate(
            [jnp.repeat(Er[:, -2:-1, :], pad, axis=1), Er_t,
             jnp.repeat(Er[:, -1:, :], pad, axis=1)], axis=1)
    er = jnp.pad(Er_t, ((0, 0), (0, L_pad - L), (0, 0))).astype(f32)        # (H, L_pad, hd)

    shared = (key is query) and (value is query)
    use_roll = _strided_roll_ok()

    x_spec = pl.BlockSpec((1, S, D), lambda b: (b, 0, 0))
    x_args = [query.astype(f32)]
    x_specs = [x_spec]
    if not shared:
        x_args += [key.astype(f32), value.astype(f32)]
        x_specs += [x_spec, x_spec]

    w_spec = pl.BlockSpec((D, 3 * D), lambda b: (0, 0))       # constant index -> fetched once
    b_spec = pl.BlockSpec((1, 3 * D), lambda b: (0, 0))
    er_spec = pl.BlockSpec((H, L_pad, hd), lambda b: (0, 0, 0))

    out_struct = jax.ShapeDtypeStruct((bs, S, D), f32)
    out_spec = pl.BlockSpec((1, S, D), lambda b: (b, 0, 0))
    if return_attn:
        out_shape = (out_struct, jax.ShapeDtypeStruct((bs, H, S, S), f32))
        out_specs = (out_spec, pl.BlockSpec((1, H, S, S), lambda b: (b, 0, 0, 0)))
    else:
        out_shape = out_struct
        out_specs = out_spec

    kernel = functools.partial(
        _mhsa_kernel, d_model=D, num_heads=H, head_dim=hd,
        shared_x=shared, with_attn=return_attn, use_roll=use_roll)

    results = pl.pallas_call(
        kernel,
        out_shape=out_shape,
        grid=(bs,),
        in_specs=x_specs + [w_spec, b_spec, er_spec],
        out_specs=out_specs,
        compiler_params=pltpu.CompilerParams(
            dimension_semantics=("parallel",),
            vmem_limit_bytes=_vmem_limit_bytes(S, D, H, L_pad, shared, return_attn)),
    )(*x_args, w_fused, b_fused, er)

    if return_attn:
        out, attn = results
        return out, attn
    return results, None


# --------------------------------------------------------------------------- #
# Pure-JAX reference, mirroring the torch forward (incl. the pad/reshape skew).
# --------------------------------------------------------------------------- #
def reference(query, key, value, params, *, num_heads, max_len):
    bs, S, D = query.shape
    H = num_heads
    hd = D // H
    L = 2 * S - 1

    q = (query @ params["Wq"].T + params["bq"]).reshape(bs, S, H, hd).transpose(0, 2, 1, 3)
    k = (key @ params["Wk"].T + params["bk"]).reshape(bs, S, H, hd).transpose(0, 2, 3, 1)
    v = (value @ params["Wv"].T + params["bv"]).reshape(bs, S, H, hd).transpose(0, 2, 1, 3)

    Er = params["Er"]
    Er_t = Er[:, max(0, max_len - S): min(2 * max_len - 1, max_len + S - 1), :]
    if S > max_len:
        pad = S - max_len
        Er_t = jnp.concatenate(
            [jnp.repeat(Er[:, -2:-1, :], pad, axis=1), Er_t,
             jnp.repeat(Er[:, -1:, :], pad, axis=1)], axis=1)
    Er_t = jnp.transpose(Er_t, (0, 2, 1))                                    # (H, hd, L)

    QEr = jnp.einsum("bhsd,hdl->bhsl", q, Er_t)                              # (bs, H, S, L)
    # skew(), exactly as in the torch module
    x = jnp.pad(QEr, ((0, 0), (0, 0), (0, 0), (0, 1)))
    x = x.reshape(bs, H, -1)
    x = jnp.pad(x, ((0, 0), (0, 0), (0, L - S)))
    x = x.reshape(bs, H, S + 1, L)
    Srel = x[:, :, :S, L - S:]

    logits = (jnp.einsum("bhsd,bhdt->bhst", q, k) + Srel) / math.sqrt(hd)
    attn = jax.nn.softmax(logits, axis=-1)
    out = jnp.einsum("bhst,bhtd->bhsd", attn, v)
    out = out.transpose(0, 2, 1, 3).reshape(bs, S, D)
    return out, attn


if __name__ == "__main__":
    bs, S, D, H, max_len = 2, 8, 32, 4, 16
    hd = D // H

    root = jax.random.PRNGKey(0)
    ks = jax.random.split(root, 10)
    bound = 1.0 / math.sqrt(D)
    params = {
        "Wq": jax.random.uniform(ks[0], (D, D), jnp.float32, -bound, bound),
        "bq": jax.random.uniform(ks[1], (D,), jnp.float32, -bound, bound),
        "Wk": jax.random.uniform(ks[2], (D, D), jnp.float32, -bound, bound),
        "bk": jax.random.uniform(ks[3], (D,), jnp.float32, -bound, bound),
        "Wv": jax.random.uniform(ks[4], (D, D), jnp.float32, -bound, bound),
        "bv": jax.random.uniform(ks[5], (D,), jnp.float32, -bound, bound),
        "Er": jax.random.normal(ks[6], (H, 2 * max_len - 1 + 2, hd), jnp.float32),
    }
    query = jax.random.normal(ks[7], (bs, S, D), jnp.float32)
    key_in = jax.random.normal(ks[8], (bs, S, D), jnp.float32)
    value = jax.random.normal(ks[9], (bs, S, D), jnp.float32)

    # Tolerance covers the EUP approximate reciprocal in the softmax divide and
    # TPU f32 matmul rounding vs. the XLA reference.
    TOL = dict(rtol=2e-2, atol=2e-2)

    # 1) distinct query / key / value
    out, attn = mhsa_relpos(query, key_in, value, params, num_heads=H, max_len=max_len)
    jax.block_until_ready((out, attn))
    out_ref, attn_ref = reference(query, key_in, value, params, num_heads=H, max_len=max_len)
    np.testing.assert_allclose(np.asarray(out), np.asarray(out_ref), **TOL)
    np.testing.assert_allclose(np.asarray(attn), np.asarray(attn_ref), **TOL)

    # 2) self-attention (query is key is value): fused single-matmul QKV path
    out_s, attn_s = mhsa_relpos(query, query, query, params, num_heads=H, max_len=max_len)
    jax.block_until_ready((out_s, attn_s))
    out_sref, attn_sref = reference(query, query, query, params, num_heads=H, max_len=max_len)
    np.testing.assert_allclose(np.asarray(out_s), np.asarray(out_sref), **TOL)
    np.testing.assert_allclose(np.asarray(attn_s), np.asarray(attn_sref), **TOL)

    # 3) attention-probability output disabled (skips the (bs, H, S, S) HBM write)
    out_na, _ = mhsa_relpos(query, query, query, params, num_heads=H, max_len=max_len,
                            return_attn=False)
    jax.block_until_ready(out_na)
    np.testing.assert_allclose(np.asarray(out_na), np.asarray(out_sref), **TOL)

    print("KERNEL_OK")
</pallas_src>

<mosaic_0001>
module attributes {stable_mosaic.version = 11 : i64} {
  func.func @probe(%arg0: memref<8x128xf32, #tpu.memory_space<vmem>>, %arg1: memref<8x128xf32, #tpu.memory_space<vmem>>) attributes {dimension_semantics = [], scalar_prefetch = 0 : i64, scratch_operands = 0 : i64, tpu.core_type = #tpu.core_type<tc>} {
    %c0 = arith.constant 0 : index
    %c0_0 = arith.constant 0 : index
    %0 = vector.load %arg0[%c0, %c0_0] : memref<8x128xf32, #tpu.memory_space<vmem>>, vector<8x128xf32>
    %c113_i32 = arith.constant 113 : i32
    %1 = tpu.dynamic_rotate %0 by %c113_i32 dim 1 {stride = 1 : si32, stride_dimension = 0 : si32} : vector<8x128xf32>, i32 -> vector<8x128xf32>
    %c0_1 = arith.constant 0 : index
    %c0_2 = arith.constant 0 : index
    %2 = vector.load %arg1[%c0_1, %c0_2] : memref<8x128xf32, #tpu.memory_space<vmem>>, vector<8x128xf32>
    tpu.vector_store %arg1[%c0_1, %c0_2], %1 {strides = array<i32>} : memref<8x128xf32, #tpu.memory_space<vmem>>, vector<8x128xf32>,
    return
  }
}

module attributes {stable_mosaic.version = 11 : i64} {
  func.func @_mhsa_kernel(%arg0: i32, %arg1: memref<1x8x32xf32, #tpu.memory_space<vmem>>, %arg2: memref<1x8x32xf32, #tpu.memory_space<vmem>>, %arg3: memref<1x8x32xf32, #tpu.memory_space<vmem>>, %arg4: memref<32x96xf32, #tpu.memory_space<vmem>>, %arg5: memref<1x96xf32, #tpu.memory_space<vmem>>, %arg6: memref<4x128x8xf32, #tpu.memory_space<vmem>>, %arg7: memref<1x8x32xf32, #tpu.memory_space<vmem>>, %arg8: memref<1x4x8x8xf32, #tpu.memory_space<vmem>>) attributes {dimension_semantics = [#tpu.dimension_semantics<parallel>], iteration_bounds = array<i64: 2>, scalar_prefetch = 0 : i64, scratch_operands = 0 : i64, tpu.core_type = #tpu.core_type<tc>, window_params = [{transform_indices = @transform_0, window_bounds = array<i64: 1, 8, 32>}, {transform_indices = @transform_1, window_bounds = array<i64: 1, 8, 32>}, {transform_indices = @transform_2, window_bounds = array<i64: 1, 8, 32>}, {pipeline_mode = #tpu.pipeline_mode<synchronous>, transform_indices = @transform_3, window_bounds = array<i64: 32, 96>}, {pipeline_mode = #tpu.pipeline_mode<synchronous>, transform_indices = @transform_4, window_bounds = array<i64: 1, 96>}, {pipeline_mode = #tpu.pipeline_mode<synchronous>, transform_indices = @transform_5, window_bounds = array<i64: 4, 128, 8>}, {transform_indices = @transform_6, window_bounds = array<i64: 1, 8, 32>}, {transform_indices = @transform_7, window_bounds = array<i64: 1, 4, 8, 8>}]} {
    %c0 = arith.constant 0 : index
    %c0_0 = arith.constant 0 : index
    %c0_1 = arith.constant 0 : index
    %0 = vector.load %arg1[%c0, %c0_0, %c0_1] : memref<1x8x32xf32, #tpu.memory_space<vmem>>, vector<1x8x32xf32>
    %1 = vector.shape_cast %0 : vector<1x8x32xf32> to vector<8x32xf32>
    %c0_2 = arith.constant 0 : index
    %c0_3 = arith.constant 0 : index
    %c0_4 = arith.constant 0 : index
    %2 = vector.load %arg2[%c0_2, %c0_3, %c0_4] : memref<1x8x32xf32, #tpu.memory_space<vmem>>, vector<1x8x32xf32>
    %3 = vector.shape_cast %2 : vector<1x8x32xf32> to vector<8x32xf32>
    %c0_5 = arith.constant 0 : index
    %c0_6 = arith.constant 0 : index
    %c0_7 = arith.constant 0 : index
    %4 = vector.load %arg3[%c0_5, %c0_6, %c0_7] : memref<1x8x32xf32, #tpu.memory_space<vmem>>, vector<1x8x32xf32>
    %5 = vector.shape_cast %4 : vector<1x8x32xf32> to vector<8x32xf32>
    %c0_8 = arith.constant 0 : index
    %c0_9 = arith.constant 0 : index
    %6 = vector.load %arg4[%c0_8, %c0_9] : memref<32x96xf32, #tpu.memory_space<vmem>>, vector<32x32xf32>
    %cst = arith.constant dense<0.000000e+00> : vector<8x32xf32>
    %7 = tpu.matmul %1, %6, %cst {dimension_numbers = #tpu.dot_dimension_numbers<[1], [0], [0], [1], [0, 0, 1, 1], [], []>} : vector<8x32xf32>, vector<32x32xf32>, vector<8x32xf32> -> vector<8x32xf32>
    %c0_10 = arith.constant 0 : index
    %c0_11 = arith.constant 0 : index
    %8 = vector.load %arg5[%c0_10, %c0_11] : memref<1x96xf32, #tpu.memory_space<vmem>>, vector<1x32xf32>
    %9 = vector.broadcast %8 : vector<1x32xf32> to vector<8x32xf32>
    %10 = arith.addf %7, %9 : vector<8x32xf32>
    %c0_12 = arith.constant 0 : index
    %c32 = arith.constant 32 : index
    %11 = vector.load %arg4[%c0_12, %c32] : memref<32x96xf32, #tpu.memory_space<vmem>>, vector<32x32xf32>
    %cst_13 = arith.constant dense<0.000000e+00> : vector<8x32xf32>
    %12 = tpu.matmul %3, %11, %cst_13 {dimension_numbers = #tpu.dot_dimension_numbers<[1], [0], [0], [1], [0, 0, 1, 1], [], []>} : vector<8x32xf32>, vector<32x32xf32>, vector<8x32xf32> -> vector<8x32xf32>
    %c0_14 = arith.constant 0 : index
    %c32_15 = arith.constant 32 : index
    %13 = vector.load %arg5[%c0_14, %c32_15] : memref<1x96xf32, #tpu.memory_space<vmem>>, vector<1x32xf32>
    %14 = vector.broadcast %13 : vector<1x32xf32> to vector<8x32xf32>
    %15 = arith.addf %12, %14 : vector<8x32xf32>
    %c0_16 = arith.constant 0 : index
    %c64 = arith.constant 64 : index
    %16 = vector.load %arg4[%c0_16, %c64] : memref<32x96xf32, #tpu.memory_space<vmem>>, vector<32x32xf32>
    %cst_17 = arith.constant dense<0.000000e+00> : vector<8x32xf32>
    %17 = tpu.matmul %5, %16, %cst_17 {dimension_numbers = #tpu.dot_dimension_numbers<[1], [0], [0], [1], [0, 0, 1, 1], [], []>} : vector<8x32xf32>, vector<32x32xf32>, vector<8x32xf32> -> vector<8x32xf32>
    %c0_18 = arith.constant 0 : index
    %c64_19 = arith.constant 64 : index
    %18 = vector.load %arg5[%c0_18, %c64_19] : memref<1x96xf32, #tpu.memory_space<vmem>>, vector<1x32xf32>
    %19 = vector.broadcast %18 : vector<1x32xf32> to vector<8x32xf32>
    %20 = arith.addf %17, %19 : vector<8x32xf32>
    %21 = vector.extract_strided_slice %10 {offsets = [0, 0], sizes = [8, 8], strides = [1, 1]} : vector<8x32xf32> to vector<8x8xf32>
    %22 = vector.extract_strided_slice %15 {offsets = [0, 0], sizes = [8, 8], strides = [1, 1]} : vector<8x32xf32> to vector<8x8xf32>
    %23 = vector.extract_strided_slice %20 {offsets = [0, 0], sizes = [8, 8], strides = [1, 1]} : vector<8x32xf32> to vector<8x8xf32>
    %c0_20 = arith.constant 0 : index
    %c0_21 = arith.constant 0 : index
    %c0_22 = arith.constant 0 : index
    %24 = vector.load %arg6[%c0_20, %c0_21, %c0_22] : memref<4x128x8xf32, #tpu.memory_space<vmem>>, vector<1x128x8xf32>
    %25 = vector.shape_cast %24 : vector<1x128x8xf32> to vector<128x8xf32>
    %26 = tpu.concatenate %25, %22 in 0 : vector<128x8xf32>, vector<8x8xf32> -> vector<136x8xf32>
    %cst_23 = arith.constant dense<0.000000e+00> : vector<8x136xf32>
    %27 = tpu.matmul %21, %26, %cst_23 {dimension_numbers = #tpu.dot_dimension_numbers<[1], [1], [0], [0], [0, 0, 1, 0], [], []>} : vector<8x8xf32>, vector<136x8xf32>, vector<8x136xf32> -> vector<8x136xf32>
    %28 = vector.extract_strided_slice %27 {offsets = [0, 0], sizes = [8, 128], strides = [1, 1]} : vector<8x136xf32> to vector<8x128xf32>
    %29 = vector.extract_strided_slice %27 {offsets = [0, 128], sizes = [8, 8], strides = [1, 1]} : vector<8x136xf32> to vector<8x8xf32>
    %30 = tpu.iota {dimensions = array<i32: 0>} : vector<8x8xi32>
    %31 = tpu.iota {dimensions = array<i32: 1>} : vector<8x8xi32>
    %32 = arith.subi %31, %30 : vector<8x8xi32>
    %c7_i32 = arith.constant 7 : i32
    %33 = vector.broadcast %c7_i32 : i32 to vector<8x8xi32>
    %34 = arith.addi %32, %33 : vector<8x8xi32>
    %c0_i32 = arith.constant 0 : i32
    %35 = vector.broadcast %c0_i32 : i32 to vector<8x8xi32>
    %36 = arith.cmpi slt, %34, %35 : vector<8x8xi32>
    %c128_i32 = arith.constant 128 : i32
    %37 = vector.broadcast %c128_i32 : i32 to vector<8x8xi32>
    %38 = arith.addi %34, %37 : vector<8x8xi32>
    %39 = arith.select %36, %38, %34 : vector<8x8xi1>, vector<8x8xi32>
    %40 = vector.shape_cast %39 : vector<8x8xi32> to vector<8x8x1xi32>
    %41 = vector.shape_cast %40 : vector<8x8x1xi32> to vector<8x8xi32>
    %42 = tpu.dynamic_gather %28[%41] in [1] : vector<8x128xf32>, vector<8x8xi32> -> vector<8x8xf32>
    %43 = arith.addf %29, %42 : vector<8x8xf32>
    %cst_24 = arith.constant dense<0xFF800000> : vector<8xf32>
    %44 = vector.multi_reduction <maximumf>, %43, %cst_24 [1] : vector<8x8xf32> to vector<8xf32>
    %45 = vector.shape_cast %44 : vector<8xf32> to vector<8x1xf32>
    %46 = vector.broadcast %45 : vector<8x1xf32> to vector<8x8xf32>
    %47 = arith.subf %43, %46 : vector<8x8xf32>
    %48 = math.exp %47 : vector<8x8xf32>
    %cst_25 = arith.constant dense<0.000000e+00> : vector<8xf32>
    %49 = vector.multi_reduction <add>, %48, %cst_25 [1] : vector<8x8xf32> to vector<8xf32>
    %50 = vector.shape_cast %49 : vector<8xf32> to vector<8x1xf32>
    %51 = tpu.reciprocal %50 {approx = true} : vector<8x1xf32> -> vector<8x1xf32>
    %52 = vector.broadcast %51 : vector<8x1xf32> to vector<8x8xf32>
    %53 = arith.mulf %48, %52 : vector<8x8xf32>
    %cst_26 = arith.constant dense<0.000000e+00> : vector<8x8xf32>
    %54 = tpu.matmul %53, %23, %cst_26 {dimension_numbers = #tpu.dot_dimension_numbers<[1], [0], [0], [1], [0, 0, 1, 1], [], []>} : vector<8x8xf32>, vector<8x8xf32>, vector<8x8xf32> -> vector<8x8xf32>
    %c0_27 = arith.constant 0 : index
    %c0_28 = arith.constant 0 : index
    %c0_29 = arith.constant 0 : index
    %c0_30 = arith.constant 0 : index
    %55 = vector.load %arg8[%c0_27, %c0_28, %c0_29, %c0_30] : memref<1x4x8x8xf32, #tpu.memory_space<vmem>>, vector<1x1x8x8xf32>
    %56 = vector.shape_cast %55 : vector<1x1x8x8xf32> to vector<8x8xf32>
    %57 = vector.shape_cast %53 : vector<8x8xf32> to vector<1x1x8x8xf32>
    tpu.vector_store %arg8[%c0_27, %c0_28, %c0_29, %c0_30], %57 {strides = array<i32>} : memref<1x4x8x8xf32, #tpu.memory_space<vmem>>, vector<1x1x8x8xf32>,
    %58 = vector.extract_strided_slice %10 {offsets = [0, 8], sizes = [8, 8], strides = [1, 1]} : vector<8x32xf32> to vector<8x8xf32>
    %59 = vector.extract_strided_slice %15 {offsets = [0, 8], sizes = [8, 8], strides = [1, 1]} : vector<8x32xf32> to vector<8x8xf32>
    %60 = vector.extract_strided_slice %20 {offsets = [0, 8], sizes = [8, 8], strides = [1, 1]} : vector<8x32xf32> to vector<8x8xf32>
    %c1 = arith.constant 1 : index
    %c0_31 = arith.constant 0 : index
    %c0_32 = arith.constant 0 : index
    %61 = vector.load %arg6[%c1, %c0_31, %c0_32] : memref<4x128x8xf32, #tpu.memory_space<vmem>>, vector<1x128x8xf32>
    %62 = vector.shape_cast %61 : vector<1x128x8xf32> to vector<128x8xf32>
    %63 = tpu.concatenate %62, %59 in 0 : vector<128x8xf32>, vector<8x8xf32> -> vector<136x8xf32>
    %cst_33 = arith.constant dense<0.000000e+00> : vector<8x136xf32>
    %64 = tpu.matmul %58, %63, %cst_33 {dimension_numbers = #tpu.dot_dimension_numbers<[1], [1], [0], [0], [0, 0, 1, 0], [], []>} : vector<8x8xf32>, vector<136x8xf32>, vector<8x136xf32> -> vector<8x136xf32>
    %65 = vector.extract_strided_slice %64 {offsets = [0, 0], sizes = [8, 128], strides = [1, 1]} : vector<8x136xf32> to vector<8x128xf32>
    %66 = vector.extract_strided_slice %64 {offsets = [0, 128], sizes = [8, 8], strides = [1, 1]} : vector<8x136xf32> to vector<8x8xf32>
    %67 = tpu.iota {dimensions = array<i32: 0>} : vector<8x8xi32>
    %68 = tpu.iota {dimensions = array<i32: 1>} : vector<8x8xi32>
    %69 = arith.subi %68, %67 : vector<8x8xi32>
    %c7_i32_34 = arith.constant 7 : i32
    %70 = vector.broadcast %c7_i32_34 : i32 to vector<8x8xi32>
    %71 = arith.addi %69, %70 : vector<8x8xi32>
    %c0_i32_35 = arith.constant 0 : i32
    %72 = vector.broadcast %c0_i32_35 : i32 to vector<8x8xi32>
    %73 = arith.cmpi slt, %71, %72 : vector<8x8xi32>
    %c128_i32_36 = arith.constant 128 : i32
    %74 = vector.broadcast %c128_i32_36 : i32 to vector<8x8xi32>
    %75 = arith.addi %71, %74 : vector<8x8xi32>
    %76 = arith.select %73, %75, %71 : vector<8x8xi1>, vector<8x8xi32>
    %77 = vector.shape_cast %76 : vector<8x8xi32> to vector<8x8x1xi32>
    %78 = vector.shape_cast %77 : vector<8x8x1xi32> to vector<8x8xi32>
    %79 = tpu.dynamic_gather %65[%78] in [1] : vector<8x128xf32>, vector<8x8xi32> -> vector<8x8xf32>
    %80 = arith.addf %66, %79 : vector<8x8xf32>
    %cst_37 = arith.constant dense<0xFF800000> : vector<8xf32>
    %81 = vector.multi_reduction <maximumf>, %80, %cst_37 [1] : vector<8x8xf32> to vector<8xf32>
    %82 = vector.shape_cast %81 : vector<8xf32> to vector<8x1xf32>
    %83 = vector.broadcast %82 : vector<8x1xf32> to vector<8x8xf32>
    %84 = arith.subf %80, %83 : vector<8x8xf32>
    %85 = math.exp %84 : vector<8x8xf32>
    %cst_38 = arith.constant dense<0.000000e+00> : vector<8xf32>
    %86 = vector.multi_reduction <add>, %85, %cst_38 [1] : vector<8x8xf32> to vector<8xf32>
    %87 = vector.shape_cast %86 : vector<8xf32> to vector<8x1xf32>
    %88 = tpu.reciprocal %87 {approx = true} : vector<8x1xf32> -> vector<8x1xf32>
    %89 = vector.broadcast %88 : vector<8x1xf32> to vector<8x8xf32>
    %90 = arith.mulf %85, %89 : vector<8x8xf32>
    %cst_39 = arith.constant dense<0.000000e+00> : vector<8x8xf32>
    %91 = tpu.matmul %90, %60, %cst_39 {dimension_numbers = #tpu.dot_dimension_numbers<[1], [0], [0], [1], [0, 0, 1, 1], [], []>} : vector<8x8xf32>, vector<8x8xf32>, vector<8x8xf32> -> vector<8x8xf32>
    %c0_40 = arith.constant 0 : index
    %c1_41 = arith.constant 1 : index
    %c0_42 = arith.constant 0 : index
    %c0_43 = arith.constant 0 : index
    %92 = vector.load %arg8[%c0_40, %c1_41, %c0_42, %c0_43] : memref<1x4x8x8xf32, #tpu.memory_space<vmem>>, vector<1x1x8x8xf32>
    %93 = vector.shape_cast %92 : vector<1x1x8x8xf32> to vector<8x8xf32>
    %94 = vector.shape_cast %90 : vector<8x8xf32> to vector<1x1x8x8xf32>
    tpu.vector_store %arg8[%c0_40, %c1_41, %c0_42, %c0_43], %94 {strides = array<i32>} : memref<1x4x8x8xf32, #tpu.memory_space<vmem>>, vector<1x1x8x8xf32>,
    %95 = vector.extract_strided_slice %10 {offsets = [0, 16], sizes = [8, 8], strides = [1, 1]} : vector<8x32xf32> to vector<8x8xf32>
    %96 = vector.extract_strided_slice %15 {offsets = [0, 16], sizes = [8, 8], strides = [1, 1]} : vector<8x32xf32> to vector<8x8xf32>
    %97 = vector.extract_strided_slice %20 {offsets = [0, 16], sizes = [8, 8], strides = [1, 1]} : vector<8x32xf32> to vector<8x8xf32>
    %c2 = arith.constant 2 : index
    %c0_44 = arith.constant 0 : index
    %c0_45 = arith.constant 0 : index
    %98 = vector.load %arg6[%c2, %c0_44, %c0_45] : memref<4x128x8xf32, #tpu.memory_space<vmem>>, vector<1x128x8xf32>
    %99 = vector.shape_cast %98 : vector<1x128x8xf32> to vector<128x8xf32>
    %100 = tpu.concatenate %99, %96 in 0 : vector<128x8xf32>, vector<8x8xf32> -> vector<136x8xf32>
    %cst_46 = arith.constant dense<0.000000e+00> : vector<8x136xf32>
    %101 = tpu.matmul %95, %100, %cst_46 {dimension_numbers = #tpu.dot_dimension_numbers<[1], [1], [0], [0], [0, 0, 1, 0], [], []>} : vector<8x8xf32>, vector<136x8xf32>, vector<8x136xf32> -> vector<8x136xf32>
    %102 = vector.extract_strided_slice %101 {offsets = [0, 0], sizes = [8, 128], strides = [1, 1]} : vector<8x136xf32> to vector<8x128xf32>
    %103 = vector.extract_strided_slice %101 {offsets = [0, 128], sizes = [8, 8], strides = [1, 1]} : vector<8x136xf32> to vector<8x8xf32>
    %104 = tpu.iota {dimensions = array<i32: 0>} : vector<8x8xi32>
    %105 = tpu.iota {dimensions = array<i32: 1>} : vector<8x8xi32>
    %106 = arith.subi %105, %104 : vector<8x8xi32>
    %c7_i32_47 = arith.constant 7 : i32
    %107 = vector.broadcast %c7_i32_47 : i32 to vector<8x8xi32>
    %108 = arith.addi %106, %107 : vector<8x8xi32>
    %c0_i32_48 = arith.constant 0 : i32
    %109 = vector.broadcast %c0_i32_48 : i32 to vector<8x8xi32>
    %110 = arith.cmpi slt, %108, %109 : vector<8x8xi32>
    %c128_i32_49 = arith.constant 128 : i32
    %111 = vector.broadcast %c128_i32_49 : i32 to vector<8x8xi32>
    %112 = arith.addi %108, %111 : vector<8x8xi32>
    %113 = arith.select %110, %112, %108 : vector<8x8xi1>, vector<8x8xi32>
    %114 = vector.shape_cast %113 : vector<8x8xi32> to vector<8x8x1xi32>
    %115 = vector.shape_cast %114 : vector<8x8x1xi32> to vector<8x8xi32>
    %116 = tpu.dynamic_gather %102[%115] in [1] : vector<8x128xf32>, vector<8x8xi32> -> vector<8x8xf32>
    %117 = arith.addf %103, %116 : vector<8x8xf32>
    %cst_50 = arith.constant dense<0xFF800000> : vector<8xf32>
    %118 = vector.multi_reduction <maximumf>, %117, %cst_50 [1] : vector<8x8xf32> to vector<8xf32>
    %119 = vector.shape_cast %118 : vector<8xf32> to vector<8x1xf32>
    %120 = vector.broadcast %119 : vector<8x1xf32> to vector<8x8xf32>
    %121 = arith.subf %117, %120 : vector<8x8xf32>
    %122 = math.exp %121 : vector<8x8xf32>
    %cst_51 = arith.constant dense<0.000000e+00> : vector<8xf32>
    %123 = vector.multi_reduction <add>, %122, %cst_51 [1] : vector<8x8xf32> to vector<8xf32>
    %124 = vector.shape_cast %123 : vector<8xf32> to vector<8x1xf32>
    %125 = tpu.reciprocal %124 {approx = true} : vector<8x1xf32> -> vector<8x1xf32>
    %126 = vector.broadcast %125 : vector<8x1xf32> to vector<8x8xf32>
    %127 = arith.mulf %122, %126 : vector<8x8xf32>
    %cst_52 = arith.constant dense<0.000000e+00> : vector<8x8xf32>
    %128 = tpu.matmul %127, %97, %cst_52 {dimension_numbers = #tpu.dot_dimension_numbers<[1], [0], [0], [1], [0, 0, 1, 1], [], []>} : vector<8x8xf32>, vector<8x8xf32>, vector<8x8xf32> -> vector<8x8xf32>
    %c0_53 = arith.constant 0 : index
    %c2_54 = arith.constant 2 : index
    %c0_55 = arith.constant 0 : index
    %c0_56 = arith.constant 0 : index
    %129 = vector.load %arg8[%c0_53, %c2_54, %c0_55, %c0_56] : memref<1x4x8x8xf32, #tpu.memory_space<vmem>>, vector<1x1x8x8xf32>
    %130 = vector.shape_cast %129 : vector<1x1x8x8xf32> to vector<8x8xf32>
    %131 = vector.shape_cast %127 : vector<8x8xf32> to vector<1x1x8x8xf32>
    tpu.vector_store %arg8[%c0_53, %c2_54, %c0_55, %c0_56], %131 {strides = array<i32>} : memref<1x4x8x8xf32, #tpu.memory_space<vmem>>, vector<1x1x8x8xf32>,
    %132 = vector.extract_strided_slice %10 {offsets = [0, 24], sizes = [8, 8], strides = [1, 1]} : vector<8x32xf32> to vector<8x8xf32>
    %133 = vector.extract_strided_slice %15 {offsets = [0, 24], sizes = [8, 8], strides = [1, 1]} : vector<8x32xf32> to vector<8x8xf32>
    %134 = vector.extract_strided_slice %20 {offsets = [0, 24], sizes = [8, 8], strides = [1, 1]} : vector<8x32xf32> to vector<8x8xf32>
    %c3 = arith.constant 3 : index
    %c0_57 = arith.constant 0 : index
    %c0_58 = arith.constant 0 : index
    %135 = vector.load %arg6[%c3, %c0_57, %c0_58] : memref<4x128x8xf32, #tpu.memory_space<vmem>>, vector<1x128x8xf32>
    %136 = vector.shape_cast %135 : vector<1x128x8xf32> to vector<128x8xf32>
    %137 = tpu.concatenate %136, %133 in 0 : vector<128x8xf32>, vector<8x8xf32> -> vector<136x8xf32>
    %cst_59 = arith.constant dense<0.000000e+00> : vector<8x136xf32>
    %138 = tpu.matmul %132, %137, %cst_59 {dimension_numbers = #tpu.dot_dimension_numbers<[1], [1], [0], [0], [0, 0, 1, 0], [], []>} : vector<8x8xf32>, vector<136x8xf32>, vector<8x136xf32> -> vector<8x136xf32>
    %139 = vector.extract_strided_slice %138 {offsets = [0, 0], sizes = [8, 128], strides = [1, 1]} : vector<8x136xf32> to vector<8x128xf32>
    %140 = vector.extract_strided_slice %138 {offsets = [0, 128], sizes = [8, 8], strides = [1, 1]} : vector<8x136xf32> to vector<8x8xf32>
    %141 = tpu.iota {dimensions = array<i32: 0>} : vector<8x8xi32>
    %142 = tpu.iota {dimensions = array<i32: 1>} : vector<8x8xi32>
    %143 = arith.subi %142, %141 : vector<8x8xi32>
    %c7_i32_60 = arith.constant 7 : i32
    %144 = vector.broadcast %c7_i32_60 : i32 to vector<8x8xi32>
    %145 = arith.addi %143, %144 : vector<8x8xi32>
    %c0_i32_61 = arith.constant 0 : i32
    %146 = vector.broadcast %c0_i32_61 : i32 to vector<8x8xi32>
    %147 = arith.cmpi slt, %145, %146 : vector<8x8xi32>
    %c128_i32_62 = arith.constant 128 : i32
    %148 = vector.broadcast %c128_i32_62 : i32 to vector<8x8xi32>
    %149 = arith.addi %145, %148 : vector<8x8xi32>
    %150 = arith.select %147, %149, %145 : vector<8x8xi1>, vector<8x8xi32>
    %151 = vector.shape_cast %150 : vector<8x8xi32> to vector<8x8x1xi32>
    %152 = vector.shape_cast %151 : vector<8x8x1xi32> to vector<8x8xi32>
    %153 = tpu.dynamic_gather %139[%152] in [1] : vector<8x128xf32>, vector<8x8xi32> -> vector<8x8xf32>
    %154 = arith.addf %140, %153 : vector<8x8xf32>
    %cst_63 = arith.constant dense<0xFF800000> : vector<8xf32>
    %155 = vector.multi_reduction <maximumf>, %154, %cst_63 [1] : vector<8x8xf32> to vector<8xf32>
    %156 = vector.shape_cast %155 : vector<8xf32> to vector<8x1xf32>
    %157 = vector.broadcast %156 : vector<8x1xf32> to vector<8x8xf32>
    %158 = arith.subf %154, %157 : vector<8x8xf32>
    %159 = math.exp %158 : vector<8x8xf32>
    %cst_64 = arith.constant dense<0.000000e+00> : vector<8xf32>
    %160 = vector.multi_reduction <add>, %159, %cst_64 [1] : vector<8x8xf32> to vector<8xf32>
    %161 = vector.shape_cast %160 : vector<8xf32> to vector<8x1xf32>
    %162 = tpu.reciprocal %161 {approx = true} : vector<8x1xf32> -> vector<8x1xf32>
    %163 = vector.broadcast %162 : vector<8x1xf32> to vector<8x8xf32>
    %164 = arith.mulf %159, %163 : vector<8x8xf32>
    %cst_65 = arith.constant dense<0.000000e+00> : vector<8x8xf32>
    %165 = tpu.matmul %164, %134, %cst_65 {dimension_numbers = #tpu.dot_dimension_numbers<[1], [0], [0], [1], [0, 0, 1, 1], [], []>} : vector<8x8xf32>, vector<8x8xf32>, vector<8x8xf32> -> vector<8x8xf32>
    %c0_66 = arith.constant 0 : index
    %c3_67 = arith.constant 3 : index
    %c0_68 = arith.constant 0 : index
    %c0_69 = arith.constant 0 : index
    %166 = vector.load %arg8[%c0_66, %c3_67, %c0_68, %c0_69] : memref<1x4x8x8xf32, #tpu.memory_space<vmem>>, vector<1x1x8x8xf32>
    %167 = vector.shape_cast %166 : vector<1x1x8x8xf32> to vector<8x8xf32>
    %168 = vector.shape_cast %164 : vector<8x8xf32> to vector<1x1x8x8xf32>
    tpu.vector_store %arg8[%c0_66, %c3_67, %c0_68, %c0_69], %168 {strides = array<i32>} : memref<1x4x8x8xf32, #tpu.memory_space<vmem>>, vector<1x1x8x8xf32>,
    %169 = tpu.concatenate %54, %91, %128, %165 in 1 : vector<8x8xf32>, vector<8x8xf32>, vector<8x8xf32>, vector<8x8xf32> -> vector<8x32xf32>
    %c0_70 = arith.constant 0 : index
    %c0_71 = arith.constant 0 : index
    %c0_72 = arith.constant 0 : index
    %170 = vector.load %arg7[%c0_70, %c0_71, %c0_72] : memref<1x8x32xf32, #tpu.memory_space<vmem>>, vector<1x8x32xf32>
    %171 = vector.shape_cast %170 : vector<1x8x32xf32> to vector<8x32xf32>
    %172 = vector.shape_cast %169 : vector<8x32xf32> to vector<1x8x32xf32>
    tpu.vector_store %arg7[%c0_70, %c0_71, %c0_72], %172 {strides = array<i32>} : memref<1x8x32xf32, #tpu.memory_space<vmem>>, vector<1x8x32xf32>,
    return
  }
  func.func @transform_0(%arg0: i32) -> (i32, i32, i32) {
    %c0_i32 = arith.constant 0 : i32
    %c0_i32_0 = arith.constant 0 : i32
    %c0_i32_1 = arith.constant 0 : i32
    return %arg0, %c0_i32, %c0_i32_0 : i32, i32, i32
  }
  func.func @transform_1(%arg0: i32) -> (i32, i32, i32) {
    %c0_i32 = arith.constant 0 : i32
    %c0_i32_0 = arith.constant 0 : i32
    %c0_i32_1 = arith.constant 0 : i32
    return %arg0, %c0_i32, %c0_i32_0 : i32, i32, i32
  }
  func.func @transform_2(%arg0: i32) -> (i32, i32, i32) {
    %c0_i32 = arith.constant 0 : i32
    %c0_i32_0 = arith.constant 0 : i32
    %c0_i32_1 = arith.constant 0 : i32
    return %arg0, %c0_i32, %c0_i32_0 : i32, i32, i32
  }
  func.func @transform_3(%arg0: i32) -> (i32, i32) {
    %c0_i32 = arith.constant 0 : i32
    %c0_i32_0 = arith.constant 0 : i32
    %c0_i32_1 = arith.constant 0 : i32
    return %c0_i32, %c0_i32_0 : i32, i32
  }
  func.func @transform_4(%arg0: i32) -> (i32, i32) {
    %c0_i32 = arith.constant 0 : i32
    %c0_i32_0 = arith.constant 0 : i32
    %c0_i32_1 = arith.constant 0 : i32
    return %c0_i32, %c0_i32_0 : i32, i32
  }
  func.func @transform_5(%arg0: i32) -> (i32, i32, i32) {
    %c0_i32 = arith.constant 0 : i32
    %c0_i32_0 = arith.constant 0 : i32
    %c0_i32_1 = arith.constant 0 : i32
    %c0_i32_2 = arith.constant 0 : i32
    return %c0_i32, %c0_i32_0, %c0_i32_1 : i32, i32, i32
  }
  func.func @transform_6(%arg0: i32) -> (i32, i32, i32) {
    %c0_i32 = arith.constant 0 : i32
    %c0_i32_0 = arith.constant 0 : i32
    %c0_i32_1 = arith.constant 0 : i32
    return %arg0, %c0_i32, %c0_i32_0 : i32, i32, i32
  }
  func.func @transform_7(%arg0: i32) -> (i32, i32, i32, i32) {
    %c0_i32 = arith.constant 0 : i32
    %c0_i32_0 = arith.constant 0 : i32
    %c0_i32_1 = arith.constant 0 : i32
    %c0_i32_2 = arith.constant 0 : i32
    return %arg0, %c0_i32, %c0_i32_0, %c0_i32_1 : i32, i32, i32, i32
  }
}

</mosaic_0001>

<llo_original>
// kernel: tpu_custom_call.1
$region0: #{tpu_custom_call.1}
  #allocation0 [shape = 'u32[]', space=smem, size = 0x4, offset = 0x4, fixed_abs, tag = 'smem constant byte address 0x4 - core index']
  #allocation1 [shape = 'u32[144,128]{1,0:T(1,128)}', space=vmem, size = 0x12000, scoped, tag = 'internal scratch']
  %s0 = inlined_call_operand.hbm [shape: f32[8,128], index: 0, kind: input, shape index: {}]
  %s1 = inlined_call_operand.hbm [shape: f32[8,128], index: 1, kind: output, shape index: {}]
  %s2 = sld [smem:[#allocation0]]
  $region18: #{tpu_custom_call.1} parent=0
    _
  %s4 = ssub.s32 1, %s2
  %s5 = scalar_select 0, %s4, %s2
  $region1: #{tpu_custom_call.1} parent=0
    #allocation2 [shape = 'u8[4096]{0}', space=vmem, size = 0x1000, scoped, tag = 'input window, operand 0, single buffered']
    #allocation3 [shape = 's32[1]{0}', space=sflag, size = 0x4, scoped, tag = 'scoped memory for tpu_custom_call.1']
    #allocation4 [shape = 's32[1]{0}', space=sflag, size = 0x4, scoped, tag = 'scoped memory for tpu_custom_call.1']
    #allocation5 [shape = 'u8[4096]{0}', space=vmem, size = 0x1000, scoped, tag = 'output window, operand 0, single buffered']
    %6 = vsyncpa [#allocation3], 0
    %7 = vsyncpa [#allocation4], 0
    // Predicated region
    $region2: #{tpu_custom_call.1} parent=1 // pred_check
      _
    $region3: #{tpu_custom_call.1} parent=1 // pred_check_branch
      %9 = sbr.rel (0) target = $region5
    $region4: #{tpu_custom_call.1} parent=1 // pred_region
      %s11 = ssub.s32 128, 128
      %12 = vsyncadd [#allocation3], %s11
      %s14 = sshll.u32 [#allocation2], 4
      %s15 = int_to_ptr.vmem [resolvable:$true] %s14
      %17 = dma.hbm_to_vmem [thread:$0]  %s0, 128, %s15, [#allocation3]
    $region5: #{tpu_custom_call.1} parent=1 // pred_fallthru
      _
    // Predicated region
    $region6: #{tpu_custom_call.1} parent=1 // pred_check
      _
    $region7: #{tpu_custom_call.1} parent=1 // pred_check_branch
      %19 = sbr.rel (0) target = $region9
    $region8: #{tpu_custom_call.1} parent=1 // pred_region
      %20 = dma.done [#allocation3], 128
    $region9: #{tpu_custom_call.1} parent=1 // pred_fallthru
      _
    %v21 = vld [vmem:[#allocation2] sm:$0xff]
    %s23 = sor.u32 256, 113
    %24 = vrot.lane.b32.xlu0 %v21, %s23
    %v25 = vpop.permute.xlu0 %24
    %26 = vst [vmem:[#allocation5] sm:$0xff] %v25
    // Predicated region
    $region10: #{tpu_custom_call.1} parent=1 // pred_check
      _
    $region11: #{tpu_custom_call.1} parent=1 // pred_check_branch
      %28 = sbr.rel (0) target = $region13
    $region12: #{tpu_custom_call.1} parent=1 // pred_region
      %s30 = ssub.s32 128, 128
      %31 = vsyncadd [#allocation4], %s30
      %s33 = sshll.u32 [#allocation5], 4
      %s34 = int_to_ptr.vmem [resolvable:$true] %s33
      %36 = dma.vmem_to_hbm [thread:$0]  %s34, 128, %s1, [#allocation4]
    $region13: #{tpu_custom_call.1} parent=1 // pred_fallthru
      _
    // Predicated region
    $region14: #{tpu_custom_call.1} parent=1 // pred_check
      _
    $region15: #{tpu_custom_call.1} parent=1 // pred_check_branch
      %38 = sbr.rel (0) target = $region17
    $region16: #{tpu_custom_call.1} parent=1 // pred_region
      %39 = dma.done [#allocation4], 128
    $region17: #{tpu_custom_call.1} parent=1 // pred_fallthru
      _
    %40 = vsyncpa [#allocation3], 1
    %41 = vsyncpa [#allocation4], 1

// kernel: tpu_custom_call.1
$region0: #{tpu_custom_call.1}
  #allocation0 [shape = 'u32[]', space=smem, size = 0x4, offset = 0x4, fixed_abs, tag = 'smem constant byte address 0x4 - core index']
  #allocation1 [shape = 'u32[144,128]{1,0:T(1,128)}', space=vmem, size = 0x12000, scoped, tag = 'internal scratch']
  %s0 = inlined_call_operand.vmem [shape: f32[2,8,32], index: 0, kind: input, shape index: {}]
  %s1 = inlined_call_operand.vmem [shape: f32[2,8,32], index: 1, kind: input, shape index: {}]
  %s2 = inlined_call_operand.vmem [shape: f32[2,8,32], index: 2, kind: input, shape index: {}]
  %s3 = inlined_call_operand.vmem [shape: f32[32,96], index: 3, kind: input, shape index: {}]
  %s4 = inlined_call_operand.vmem [shape: f32[1,96], index: 4, kind: input, shape index: {}]
  %s5 = inlined_call_operand.vmem [shape: f32[4,128,8], index: 5, kind: input, shape index: {}]
  %s6 = inlined_call_operand.hbm [shape: f32[2,8,32], index: 6, kind: output, shape index: {0}]
  %s7 = inlined_call_operand.hbm [shape: f32[2,4,8,8], index: 7, kind: output, shape index: {1}]
  %8 = xla_tuple %s6, %s7
  %s9 = sld [smem:[#allocation0]]
  $region65: #{tpu_custom_call.1} parent=0
    _
  %s11 = ssub.s32 1, %s9
  %s12 = scalar_select 0, %s11, %s9
  $region1: #{tpu_custom_call.1} parent=0
    #allocation2 [shape = 'u8[8192]{0}', space=vmem, size = 0x2000, scoped, tag = 'output window, operand 0']
    #allocation3 [shape = 's32[2]{0}', space=sflag, size = 0x8, scoped, tag = 'scoped memory for tpu_custom_call.1']
    #allocation4 [shape = 'u8[32768]{0}', space=vmem, size = 0x8000, scoped, tag = 'output window, operand 1']
    #allocation5 [shape = 's32[2]{0}', space=sflag, size = 0x8, scoped, tag = 'scoped memory for tpu_custom_call.1']
    %13 = vsyncpa [#allocation3], 0
    %s14 = scalar_lea.sflag [#allocation3], 1
    %15 = vsyncpa %s14, 0
    %16 = vsyncpa [#allocation5], 0
    %s17 = scalar_lea.sflag [#allocation5], 1
    %18 = vsyncpa %s17, 0
    loop: start=0, step=1, limit=4
    $region2: #{tpu_custom_call.1} parent=1 // loop_pre_header
      _
    $region3: #{tpu_custom_call.1} parent=1 // loop_header
      %s20 = sphi 0, %s24
      %p21 = scmp.ge.s32.totalorder %s20, 4
      %s30 = sphi 0, %s32
      %s33 = sphi 0, %s30
      %s34 = sphi 0, %s33
      %s50 = sphi 0, %s34
      %s56 = sphi 0, %s58
      %s59 = sphi 0, %s56
      %s60 = sphi 0, %s59
      %s76 = sphi 0, %s60
      %s82 = sphi 0, %s84
      %s85 = sphi 0, %s82
      %s86 = sphi 0, %s85
      %s102 = sphi 0, %s86
      %s106 = sphi 0, %s106
      %s108 = sphi 0, %s106
      %s109 = sphi 0, %s108
      %s123 = sphi 0, %s109
      %s127 = sphi 0, %s127
      %s129 = sphi 0, %s127
      %s130 = sphi 0, %s129
      %s144 = sphi 0, %s130
      %s148 = sphi 0, %s148
      %s150 = sphi 0, %s148
      %s151 = sphi 0, %s150
      %s165 = sphi 0, %s151
      %s171 = sphi 0, %s173
      %s174 = sphi 0, %s171
      %s175 = sphi 0, %s174
      %s191 = sphi 0, %s175
      %s197 = sphi 0, %s199
      %s200 = sphi 0, %s197
      %s201 = sphi 0, %s200
      %s217 = sphi 0, %s201
    $region4: #{tpu_custom_call.1} parent=1 // loop_header_branch
      %23 = sbr.rel (%p21) target = $region8
    $region5: #{tpu_custom_call.1} parent=1 // loop_body
      %s25 = ssub.s32 %s20, 1
      %s26 = ssub.s32 %s20, 2
      %s27 = sadd.s32 %s20, 1
      %s28 = ssub.s32 %s20, %s27
      %p29 = scmp.eq.s32.totalorder %s28, 0
      %s31 = sadd.s32 %s30, 1
      %s32 = scalar_select %p29, %s30, %s31
      %p35 = pneg %p29
      %p36 = scmp.eq.s32.totalorder %s20, 1
      %p37 = por %p35, %p36
      %p38 = scmp.ne.s32.totalorder %s30, %s33
      %p39 = scmp.eq.s32.totalorder %s20, 0
      %p40 = por %p38, %p39
      %p41 = scmp.ne.s32.totalorder %s30, %s33
      %p42 = scmp.eq.s32.totalorder %s25, 1
      %p43 = por %p41, %p42
      %p44 = scmp.ne.s32.totalorder %s33, %s34
      %p45 = scmp.eq.s32.totalorder %s25, 0
      %p46 = por %p44, %p45
      %p47 = scmp.ne.s32.totalorder %s33, %s34
      %p48 = scmp.eq.s32.totalorder %s26, 1
      %p49 = por %p47, %p48
      %p51 = scmp.ne.s32.totalorder %s34, %s50
      %p52 = scmp.eq.s32.totalorder %s26, 0
      %p53 = por %p51, %p52
      %s54 = ssub.s32 %s20, %s27
      %p55 = scmp.eq.s32.totalorder %s54, 0
      %s57 = sadd.s32 %s56, 1
      %s58 = scalar_select %p55, %s56, %s57
      %p61 = pneg %p55
      %p62 = scmp.eq.s32.totalorder %s20, 1
      %p63 = por %p61, %p62
      %p64 = scmp.ne.s32.totalorder %s56, %s59
      %p65 = scmp.eq.s32.totalorder %s20, 0
      %p66 = por %p64, %p65
      %p67 = scmp.ne.s32.totalorder %s56, %s59
      %p68 = scmp.eq.s32.totalorder %s25, 1
      %p69 = por %p67, %p68
      %p70 = scmp.ne.s32.totalorder %s59, %s60
      %p71 = scmp.eq.s32.totalorder %s25, 0
      %p72 = por %p70, %p71
      %p73 = scmp.ne.s32.totalorder %s59, %s60
      %p74 = scmp.eq.s32.totalorder %s26, 1
      %p75 = por %p73, %p74
      %p77 = scmp.ne.s32.totalorder %s60, %s76
      %p78 = scmp.eq.s32.totalorder %s26, 0
      %p79 = por %p77, %p78
      %s80 = ssub.s32 %s20, %s27
      %p81 = scmp.eq.s32.totalorder %s80, 0
      %s83 = sadd.s32 %s82, 1
      %s84 = scalar_select %p81, %s82, %s83
      %p87 = pneg %p81
      %p88 = scmp.eq.s32.totalorder %s20, 1
      %p89 = por %p87, %p88
      %p90 = scmp.ne.s32.totalorder %s82, %s85
      %p91 = scmp.eq.s32.totalorder %s20, 0
      %p92 = por %p90, %p91
      %p93 = scmp.ne.s32.totalorder %s82, %s85
      %p94 = scmp.eq.s32.totalorder %s25, 1
      %p95 = por %p93, %p94
      %p96 = scmp.ne.s32.totalorder %s85, %s86
      %p97 = scmp.eq.s32.totalorder %s25, 0
      %p98 = por %p96, %p97
      %p99 = scmp.ne.s32.totalorder %s85, %s86
      %p100 = scmp.eq.s32.totalorder %s26, 1
      %p101 = por %p99, %p100
      %p103 = scmp.ne.s32.totalorder %s86, %s102
      %p104 = scmp.eq.s32.totalorder %s26, 0
      %p105 = por %p103, %p104
      %s107 = sadd.s32 %s106, 1
      %p110 = scmp.eq.s32.totalorder %s20, 1
      %p111 = scmp.ne.s32.totalorder %s106, %s108
      %p112 = scmp.eq.s32.totalorder %s20, 0
      %p113 = por %p111, %p112
      %p114 = scmp.ne.s32.totalorder %s106, %s108
      %p115 = scmp.eq.s32.totalorder %s25, 1
      %p116 = por %p114, %p115
      %p117 = scmp.ne.s32.totalorder %s108, %s109
      %p118 = scmp.eq.s32.totalorder %s25, 0
      %p119 = por %p117, %p118
      %p120 = scmp.ne.s32.totalorder %s108, %s109
      %p121 = scmp.eq.s32.totalorder %s26, 1
      %p122 = por %p120, %p121
      %p124 = scmp.ne.s32.totalorder %s109, %s123
      %p125 = scmp.eq.s32.totalorder %s26, 0
      %p126 = por %p124, %p125
      %s128 = sadd.s32 %s127, 1
      %p131 = scmp.eq.s32.totalorder %s20, 1
      %p132 = scmp.ne.s32.totalorder %s127, %s129
      %p133 = scmp.eq.s32.totalorder %s20, 0
      %p134 = por %p132, %p133
      %p135 = scmp.ne.s32.totalorder %s127, %s129
      %p136 = scmp.eq.s32.totalorder %s25, 1
      %p137 = por %p135, %p136
      %p138 = scmp.ne.s32.totalorder %s129, %s130
      %p139 = scmp.eq.s32.totalorder %s25, 0
      %p140 = por %p138, %p139
      %p141 = scmp.ne.s32.totalorder %s129, %s130
      %p142 = scmp.eq.s32.totalorder %s26, 1
      %p143 = por %p141, %p142
      %p145 = scmp.ne.s32.totalorder %s130, %s144
      %p146 = scmp.eq.s32.totalorder %s26, 0
      %p147 = por %p145, %p146
      %s149 = sadd.s32 %s148, 1
      %p152 = scmp.eq.s32.totalorder %s20, 1
      %p153 = scmp.ne.s32.totalorder %s148, %s150
      %p154 = scmp.eq.s32.totalorder %s20, 0
      %p155 = por %p153, %p154
      %p156 = scmp.ne.s32.totalorder %s148, %s150
      %p157 = scmp.eq.s32.totalorder %s25, 1
      %p158 = por %p156, %p157
      %p159 = scmp.ne.s32.totalorder %s150, %s151
      %p160 = scmp.eq.s32.totalorder %s25, 0
      %p161 = por %p159, %p160
      %p162 = scmp.ne.s32.totalorder %s150, %s151
      %p163 = scmp.eq.s32.totalorder %s26, 1
      %p164 = por %p162, %p163
      %p166 = scmp.ne.s32.totalorder %s151, %s165
      %p167 = scmp.eq.s32.totalorder %s26, 0
      %p168 = por %p166, %p167
      %s169 = ssub.s32 %s20, %s27
      %p170 = scmp.eq.s32.totalorder %s169, 0
      %s172 = sadd.s32 %s171, 1
      %s173 = scalar_select %p170, %s171, %s172
      %p176 = pneg %p170
      %p177 = scmp.eq.s32.totalorder %s20, 1
      %p178 = por %p176, %p177
      %p179 = scmp.ne.s32.totalorder %s171, %s174
      %p180 = scmp.eq.s32.totalorder %s20, 0
      %p181 = por %p179, %p180
      %p182 = scmp.ne.s32.totalorder %s171, %s174
      %p183 = scmp.eq.s32.totalorder %s25, 1
      %p184 = por %p182, %p183
      %p185 = scmp.ne.s32.totalorder %s174, %s175
      %p186 = scmp.eq.s32.totalorder %s25, 0
      %p187 = por %p185, %p186
      %p188 = scmp.ne.s32.totalorder %s174, %s175
      %p189 = scmp.eq.s32.totalorder %s26, 1
      %p190 = por %p188, %p189
      %p192 = scmp.ne.s32.totalorder %s175, %s191
      %p193 = scmp.eq.s32.totalorder %s26, 0
      %p194 = por %p192, %p193
      %s195 = ssub.s32 %s20, %s27
      %p196 = scmp.eq.s32.totalorder %s195, 0
      %s198 = sadd.s32 %s197, 1
      %s199 = scalar_select %p196, %s197, %s198
      %p202 = pneg %p196
      %p203 = scmp.eq.s32.totalorder %s20, 1
      %p204 = por %p202, %p203
      %p205 = scmp.ne.s32.totalorder %s197, %s200
      %p206 = scmp.eq.s32.totalorder %s20, 0
      %p207 = por %p205, %p206
      %p208 = scmp.ne.s32.totalorder %s197, %s200
      %p209 = scmp.eq.s32.totalorder %s25, 1
      %p210 = por %p208, %p209
      %p211 = scmp.ne.s32.totalorder %s200, %s201
      %p212 = scmp.eq.s32.totalorder %s25, 0
      %p213 = por %p211, %p212
      %p214 = scmp.ne.s32.totalorder %s200, %s201
      %p215 = scmp.eq.s32.totalorder %s26, 1
      %p216 = por %p214, %p215
      %p218 = scmp.ne.s32.totalorder %s201, %s217
      %p219 = scmp.eq.s32.totalorder %s26, 0
      %p220 = por %p218, %p219
      %p221 = scmp.le.s32.totalorder 1, %s20
      %p222 = scmp.lt.s32.totalorder %s20, 3
      %p223 = pnand %p221, %p222
      %p224 = pneg %p223
      // Predicated region
      $region9: #{tpu_custom_call.1} parent=5 // pred_check
        _
      $region10: #{tpu_custom_call.1} parent=5 // pred_check_branch
        %226 = sbr.rel (%p223) target = $region12
      $region11: #{tpu_custom_call.1} parent=5 // pred_region
        %s227 = ssub.s32 %s20, 1
        // Predicated region
        $region13: #{tpu_custom_call.1} parent=11 // pred_check
          %p228 = pneg %p119
        $region14: #{tpu_custom_call.1} parent=11 // pred_check_branch
          %230 = sbr.rel (%p228) target = $region16
        $region15: #{tpu_custom_call.1} parent=11 // pred_region
          _
        $region16: #{tpu_custom_call.1} parent=11 // pred_fallthru
          _
        // Predicated region
        $region17: #{tpu_custom_call.1} parent=11 // pred_check
          %p231 = pneg %p140
        $region18: #{tpu_custom_call.1} parent=11 // pred_check_branch
          %233 = sbr.rel (%p231) target = $region20
        $region19: #{tpu_custom_call.1} parent=11 // pred_region
          _
        $region20: #{tpu_custom_call.1} parent=11 // pred_fallthru
          _
        // Predicated region
        $region21: #{tpu_custom_call.1} parent=11 // pred_check
          %p234 = pneg %p161
        $region22: #{tpu_custom_call.1} parent=11 // pred_check_branch
          %236 = sbr.rel (%p234) target = $region24
        $region23: #{tpu_custom_call.1} parent=11 // pred_region
          _
        $region24: #{tpu_custom_call.1} parent=11 // pred_fallthru
          _
      $region12: #{tpu_custom_call.1} parent=5 // pred_fallthru
        _
      %p237 = scmp.lt.s32.totalorder %s20, 2
      // Predicated region
      $region25: #{tpu_custom_call.1} parent=5 // pred_check
        %p238 = pneg %p237
      $region26: #{tpu_custom_call.1} parent=5 // pred_check_branch
        %240 = sbr.rel (%p238) target = $region28
      $region27: #{tpu_custom_call.1} parent=5 // pred_region
        // Predicated region
        $region29: #{tpu_custom_call.1} parent=27 // pred_check
          %p241 = pneg %p40
        $region30: #{tpu_custom_call.1} parent=27 // pred_check_branch
          %243 = sbr.rel (%p241) target = $region32
        $region31: #{tpu_custom_call.1} parent=27 // pred_region
          %p244 = scmp.lt.s32.totalorder %s20, 1
          %s245 = scalar_select %p244, %s20, 1
          %s246 = smul.addr %s245, 8
          %s247 = scalar_lea.vmem %s0, %s246
        $region32: #{tpu_custom_call.1} parent=27 // pred_fallthru
          _
        // Predicated region
        $region33: #{tpu_custom_call.1} parent=27 // pred_check
          %p248 = pneg %p66
        $region34: #{tpu_custom_call.1} parent=27 // pred_check_branch
          %250 = sbr.rel (%p248) target = $region36
        $region35: #{tpu_custom_call.1} parent=27 // pred_region
          %p251 = scmp.lt.s32.totalorder %s20, 1
          %s252 = scalar_select %p251, %s20, 1
          %s253 = smul.addr %s252, 8
          %s254 = scalar_lea.vmem %s1, %s253
        $region36: #{tpu_custom_call.1} parent=27 // pred_fallthru
          _
        // Predicated region
        $region37: #{tpu_custom_call.1} parent=27 // pred_check
          %p255 = pneg %p92
        $region38: #{tpu_custom_call.1} parent=27 // pred_check_branch
          %257 = sbr.rel (%p255) target = $region40
        $region39: #{tpu_custom_call.1} parent=27 // pred_region
          %p258 = scmp.lt.s32.totalorder %s20, 1
          %s259 = scalar_select %p258, %s20, 1
          %s260 = smul.addr %s259, 8
          %s261 = scalar_lea.vmem %s2, %s260
        $region40: #{tpu_custom_call.1} parent=27 // pred_fallthru
          _
      $region28: #{tpu_custom_call.1} parent=5 // pred_fallthru
        _
      %p262 = scmp.le.s32.totalorder 1, %s20
      %p263 = scmp.lt.s32.totalorder %s20, 3
      %p264 = pnand %p262, %p263
      %p265 = pneg %p264
      // Predicated region
      $region41: #{tpu_custom_call.1} parent=5 // pred_check
        _
      $region42: #{tpu_custom_call.1} parent=5 // pred_check_branch
        %267 = sbr.rel (%p264) target = $region44
      $region43: #{tpu_custom_call.1} parent=5 // pred_region
        %s268 = ssub.s32 %s20, 1
        %p269 = scmp.lt.s32.totalorder %s25, 1
        %s270 = scalar_select %p269, %s25, 1
        %s271 = smul.addr %s270, 8
        %s272 = scalar_lea.vmem %s0, %s271
        %p273 = pneg %p46
        %p274 = pneg %p43
        %p275 = scmp.lt.s32.totalorder %s25, 1
        %s276 = scalar_select %p275, %s25, 1
        %s277 = smul.addr %s276, 8
        %s278 = scalar_lea.vmem %s1, %s277
        %p279 = pneg %p72
        %p280 = pneg %p69
        %p281 = scmp.lt.s32.totalorder %s25, 1
        %s282 = scalar_select %p281, %s25, 1
        %s283 = smul.addr %s282, 8
        %s284 = scalar_lea.vmem %s2, %s283
        %p285 = pneg %p98
        %p286 = pneg %p95
        %p287 = pneg %p119
        %p288 = pneg %p116
        %p289 = pneg %p140
        %p290 = pneg %p137
        %p291 = pneg %p161
        %p292 = pneg %p158
        %p293 = pneg %p187
        %p294 = pneg %p184
        %s295 = sand.u32 %s174, 1
        %s296 = scalar_lea.sflag [#allocation3], %s295
        %s297 = sand.u32 %s174, 1
        %s298 = smul.addr %s297, 8
        %s299 = scalar_lea.vmem [#allocation2], %s298
        %p300 = pneg %p213
        %p301 = pneg %p210
        %s302 = sand.u32 %s200, 1
        %s303 = scalar_lea.sflag [#allocation5], %s302
        %s304 = sand.u32 %s200, 1
        %s305 = smul.addr %s304, 32
        %s306 = scalar_lea.vmem [#allocation4], %s305
        %p307 = scmp.lt.s32.totalorder %s25, 1
        %s308 = scalar_select %p307, %s25, 1
        %s309 = smul.addr %s308, 8
        %s310 = scalar_lea.vmem %s0, %s309
        %p311 = scmp.lt.s32.totalorder %s25, 1
        %s312 = scalar_select %p311, %s25, 1
        %s313 = smul.addr %s312, 8
        %s314 = scalar_lea.vmem %s1, %s313
        %p315 = scmp.lt.s32.totalorder %s25, 1
        %s316 = scalar_select %p315, %s25, 1
        %s317 = smul.addr %s316, 8
        %s318 = scalar_lea.vmem %s2, %s317
        %v319 = vld [vmem:[%s310] sm:$0xff]
        %v320 = vld [vmem:[%s314] sm:$0xff]
        %v321 = vld [vmem:[%s318] sm:$0xff]
        %v322 = vld [vmem:[%s3] sm:$0xff]
        %v323 = vld [vmem:[%s3 + $0x8] sm:$0xff]
        %v324 = vld [vmem:[%s3 + $0x10] sm:$0xff]
        %v325 = vld [vmem:[%s3 + $0x18] sm:$0xff]
        %v326 = vld [vmem:[%s4] sm:$0x1]
        %v328 = vlaneseq
        %v329 = vshrl.u32 %v328, 7
        %v330 = vsub.s32 0, %v329
        %v331 = vrot.slane %v326, %v330
        %vm333 = vcmask 261120
        %v335 = vsel %vm333, %v319, 0
        %337 = vmatprep.subr.mxu0 0.0
        %338 = vmatpush1.msra.mxu0 0.0
        %339 = vmatprep.subr.mxu0 0.0
        %340 = vmatpush1.msra.mxu0 0.0
        %341 = vmatprep.subr.mxu0 0.0
        %342 = vmatpush1.msra.mxu0 0.0
        %343 = vmatprep.subr.mxu0 0.0
        %344 = vmatpush1.msra.mxu0 0.0
        %345 = vmatprep.subr.mxu0 0.0
        %346 = vmatpush1.msra.mxu0 0.0
        %347 = vmatprep.subr.mxu0 0.0
        %348 = vmatpush1.msra.mxu0 0.0
        %349 = vmatprep.subr.mxu0 0.0
        %350 = vmatpush1.msra.mxu0 0.0
        %351 = vmatprep.subr.mxu0 0.0
        %352 = vmatpush1.msra.mxu0 0.0
        %353 = vmatprep.subr.mxu0 0.0
        %354 = vmatpush1.msra.mxu0 0.0
        %355 = vmatprep.subr.mxu0 0.0
        %356 = vmatpush1.msra.mxu0 0.0
        %357 = vmatprep.subr.mxu0 0.0
        %358 = vmatpush1.msra.mxu0 0.0
        %359 = vmatprep.subr.mxu0 0.0
        %360 = vmatpush1.msra.mxu0 0.0
        %361 = vmatprep.subr.mxu0 0.0
        %362 = vmatpush1.msra.mxu0 %v325
        %363 = vmatprep.subr.mxu0 0.0
        %364 = vmatpush1.msra.mxu0 %v324
        %365 = vmatprep.subr.mxu0 0.0
        %366 = vmatpush1.msra.mxu0 %v323
        %367 = vmatprep.subr.mxu0 0.0
        %368 = vmatpush1.msra.mxu0 %v322
        %369 = vmatprep.subr.mxu0 0.0
        %370 = vmatpush2.msra.mxu0 0.0
        %371 = vmatprep.subr.mxu0 0.0
        %372 = vmatpush2.msra.mxu0 0.0
        %373 = vmatprep.subr.mxu0 0.0
        %374 = vmatpush2.msra.mxu0 0.0
        %375 = vmatprep.subr.mxu0 0.0
        %376 = vmatpush2.msra.mxu0 0.0
        %377 = vmatprep.subr.mxu0 0.0
        %378 = vmatpush2.msra.mxu0 0.0
        %379 = vmatprep.subr.mxu0 0.0
        %380 = vmatpush2.msra.mxu0 0.0
        %381 = vmatprep.subr.mxu0 0.0
        %382 = vmatpush2.msra.mxu0 0.0
        %383 = vmatprep.subr.mxu0 0.0
        %384 = vmatpush2.msra.mxu0 0.0
        %385 = vmatprep.subr.mxu0 0.0
        %386 = vmatpush2.msra.mxu0 0.0
        %387 = vmatprep.subr.mxu0 0.0
        %388 = vmatpush2.msra.mxu0 0.0
        %389 = vmatprep.subr.mxu0 0.0
        %390 = vmatpush2.msra.mxu0 0.0
        %391 = vmatprep.subr.mxu0 0.0
        %392 = vmatpush2.msra.mxu0 0.0
        %393 = vmatprep.subr.mxu0 0.0
        %394 = vmatpush2.msra.mxu0 0.0
        %395 = vmatprep.subr.mxu0 0.0
        %396 = vmatpush2.msra.mxu0 0.0
        %397 = vmatprep.subr.mxu0 0.0
        %398 = vmatpush2.msra.mxu0 0.0
        %399 = vmatprep.subr.mxu0 0.0
        %400 = vmatpush2.msra.mxu0 0.0
        %401 = vmatprep.mubr.f32.mxu0 0.0
        %402 = vmatmul.mubr.f32.gmra.mxu0 %v335
        %v403 = vpop.f32.mrf.mxu0
        %v404 = vadd.f32 %v331, %v403
        %v405 = vpop.f32.mrf.mxu0
        %406 = vdwg.mxu0
        %411 = vrot.lane.b32.xlu0 %v322, 96
        %v412 = vpop.permute.xlu0 %411
        %413 = vrot.lane.b32.xlu0 %v323, 96
        %v414 = vpop.permute.xlu0 %413
        %415 = vrot.lane.b32.xlu0 %v324, 96
        %v416 = vpop.permute.xlu0 %415
        %417 = vrot.lane.b32.xlu0 %v325, 96
        %v418 = vpop.permute.xlu0 %417
        %423 = vrot.lane.b32.xlu0 %v331, 96
        %v424 = vpop.permute.xlu0 %423
        %v427 = vsel %vm333, %v320, 0
        %429 = vmatprep.subr.mxu0 0.0
        %430 = vmatpush1.msra.mxu0 0.0
        %431 = vmatprep.subr.mxu0 0.0
        %432 = vmatpush1.msra.mxu0 0.0
        %433 = vmatprep.subr.mxu0 0.0
        %434 = vmatpush1.msra.mxu0 0.0
        %435 = vmatprep.subr.mxu0 0.0
        %436 = vmatpush1.msra.mxu0 0.0
        %437 = vmatprep.subr.mxu0 0.0
        %438 = vmatpush1.msra.mxu0 0.0
        %439 = vmatprep.subr.mxu0 0.0
        %440 = vmatpush1.msra.mxu0 0.0
        %441 = vmatprep.subr.mxu0 0.0
        %442 = vmatpush1.msra.mxu0 0.0
        %443 = vmatprep.subr.mxu0 0.0
        %444 = vmatpush1.msra.mxu0 0.0
        %445 = vmatprep.subr.mxu0 0.0
        %446 = vmatpush1.msra.mxu0 0.0
        %447 = vmatprep.subr.mxu0 0.0
        %448 = vmatpush1.msra.mxu0 0.0
        %449 = vmatprep.subr.mxu0 0.0
        %450 = vmatpush1.msra.mxu0 0.0
        %451 = vmatprep.subr.mxu0 0.0
        %452 = vmatpush1.msra.mxu0 0.0
        %453 = vmatprep.subr.mxu0 0.0
        %454 = vmatpush1.msra.mxu0 %v418
        %455 = vmatprep.subr.mxu0 0.0
        %456 = vmatpush1.msra.mxu0 %v416
        %457 = vmatprep.subr.mxu0 0.0
        %458 = vmatpush1.msra.mxu0 %v414
        %459 = vmatprep.subr.mxu0 0.0
        %460 = vmatpush1.msra.mxu0 %v412
        %461 = vmatprep.subr.mxu0 0.0
        %462 = vmatpush2.msra.mxu0 0.0
        %463 = vmatprep.subr.mxu0 0.0
        %464 = vmatpush2.msra.mxu0 0.0
        %465 = vmatprep.subr.mxu0 0.0
        %466 = vmatpush2.msra.mxu0 0.0
        %467 = vmatprep.subr.mxu0 0.0
        %468 = vmatpush2.msra.mxu0 0.0
        %469 = vmatprep.subr.mxu0 0.0
        %470 = vmatpush2.msra.mxu0 0.0
        %471 = vmatprep.subr.mxu0 0.0
        %472 = vmatpush2.msra.mxu0 0.0
        %473 = vmatprep.subr.mxu0 0.0
        %474 = vmatpush2.msra.mxu0 0.0
        %475 = vmatprep.subr.mxu0 0.0
        %476 = vmatpush2.msra.mxu0 0.0
        %477 = vmatprep.subr.mxu0 0.0
        %478 = vmatpush2.msra.mxu0 0.0
        %479 = vmatprep.subr.mxu0 0.0
        %480 = vmatpush2.msra.mxu0 0.0
        %481 = vmatprep.subr.mxu0 0.0
        %482 = vmatpush2.msra.mxu0 0.0
        %483 = vmatprep.subr.mxu0 0.0
        %484 = vmatpush2.msra.mxu0 0.0
        %485 = vmatprep.subr.mxu0 0.0
        %486 = vmatpush2.msra.mxu0 0.0
        %487 = vmatprep.subr.mxu0 0.0
        %488 = vmatpush2.msra.mxu0 0.0
        %489 = vmatprep.subr.mxu0 0.0
        %490 = vmatpush2.msra.mxu0 0.0
        %491 = vmatprep.subr.mxu0 0.0
        %492 = vmatpush2.msra.mxu0 0.0
        %493 = vmatprep.mubr.f32.mxu0 0.0
        %494 = vmatmul.mubr.f32.gmra.mxu0 %v427
        %v495 = vpop.f32.mrf.mxu0
        %v496 = vadd.f32 %v424, %v495
        %v497 = vpop.f32.mrf.mxu0
        %498 = vdwg.mxu0
        %499 = vrot.lane.b32.xlu0 %v322, 64
        %v500 = vpop.permute.xlu0 %499
        %501 = vrot.lane.b32.xlu0 %v323, 64
        %v502 = vpop.permute.xlu0 %501
        %503 = vrot.lane.b32.xlu0 %v324, 64
        %v504 = vpop.permute.xlu0 %503
        %505 = vrot.lane.b32.xlu0 %v325, 64
        %v506 = vpop.permute.xlu0 %505
        %511 = vrot.lane.b32.xlu0 %v331, 64
        %v512 = vpop.permute.xlu0 %511
        %v515 = vsel %vm333, %v321, 0
        %517 = vmatprep.subr.mxu0 0.0
        %518 = vmatpush1.msra.mxu0 0.0
        %519 = vmatprep.subr.mxu0 0.0
        %520 = vmatpush1.msra.mxu0 0.0
        %521 = vmatprep.subr.mxu0 0.0
        %522 = vmatpush1.msra.mxu0 0.0
        %523 = vmatprep.subr.mxu0 0.0
        %524 = vmatpush1.msra.mxu0 0.0
        %525 = vmatprep.subr.mxu0 0.0
        %526 = vmatpush1.msra.mxu0 0.0
        %527 = vmatprep.subr.mxu0 0.0
        %528 = vmatpush1.msra.mxu0 0.0
        %529 = vmatprep.subr.mxu0 0.0
        %530 = vmatpush1.msra.mxu0 0.0
        %531 = vmatprep.subr.mxu0 0.0
        %532 = vmatpush1.msra.mxu0 0.0
        %533 = vmatprep.subr.mxu0 0.0
        %534 = vmatpush1.msra.mxu0 0.0
        %535 = vmatprep.subr.mxu0 0.0
        %536 = vmatpush1.msra.mxu0 0.0
        %537 = vmatprep.subr.mxu0 0.0
        %538 = vmatpush1.msra.mxu0 0.0
        %539 = vmatprep.subr.mxu0 0.0
        %540 = vmatpush1.msra.mxu0 0.0
        %541 = vmatprep.subr.mxu0 0.0
        %542 = vmatpush1.msra.mxu0 %v506
        %543 = vmatprep.subr.mxu0 0.0
        %544 = vmatpush1.msra.mxu0 %v504
        %545 = vmatprep.subr.mxu0 0.0
        %546 = vmatpush1.msra.mxu0 %v502
        %547 = vmatprep.subr.mxu0 0.0
        %548 = vmatpush1.msra.mxu0 %v500
        %549 = vmatprep.subr.mxu0 0.0
        %550 = vmatpush2.msra.mxu0 0.0
        %551 = vmatprep.subr.mxu0 0.0
        %552 = vmatpush2.msra.mxu0 0.0
        %553 = vmatprep.subr.mxu0 0.0
        %554 = vmatpush2.msra.mxu0 0.0
        %555 = vmatprep.subr.mxu0 0.0
        %556 = vmatpush2.msra.mxu0 0.0
        %557 = vmatprep.subr.mxu0 0.0
        %558 = vmatpush2.msra.mxu0 0.0
        %559 = vmatprep.subr.mxu0 0.0
        %560 = vmatpush2.msra.mxu0 0.0
        %561 = vmatprep.subr.mxu0 0.0
        %562 = vmatpush2.msra.mxu0 0.0
        %563 = vmatprep.subr.mxu0 0.0
        %564 = vmatpush2.msra.mxu0 0.0
        %565 = vmatprep.subr.mxu0 0.0
        %566 = vmatpush2.msra.mxu0 0.0
        %567 = vmatprep.subr.mxu0 0.0
        %568 = vmatpush2.msra.mxu0 0.0
        %569 = vmatprep.subr.mxu0 0.0
        %570 = vmatpush2.msra.mxu0 0.0
        %571 = vmatprep.subr.mxu0 0.0
        %572 = vmatpush2.msra.mxu0 0.0
        %573 = vmatprep.subr.mxu0 0.0
        %574 = vmatpush2.msra.mxu0 0.0
        %575 = vmatprep.subr.mxu0 0.0
        %576 = vmatpush2.msra.mxu0 0.0
        %577 = vmatprep.subr.mxu0 0.0
        %578 = vmatpush2.msra.mxu0 0.0
        %579 = vmatprep.subr.mxu0 0.0
        %580 = vmatpush2.msra.mxu0 0.0
        %581 = vmatprep.mubr.f32.mxu0 0.0
        %582 = vmatmul.mubr.f32.gmra.mxu0 %v515
        %v583 = vpop.f32.mrf.mxu0
        %v584 = vadd.f32 %v512, %v583
        %v585 = vpop.f32.mrf.mxu0
        %586 = vdwg.mxu0
        %v587 = vld [vmem:[%s5] sm:$0xff]
        %v588 = vld [vmem:[%s5 + $0x8] sm:$0xff]
        %v589 = vld [vmem:[%s5 + $0x10] sm:$0xff]
        %v590 = vld [vmem:[%s5 + $0x18] sm:$0xff]
        %v591 = vld [vmem:[%s5 + $0x20] sm:$0xff]
        %v592 = vld [vmem:[%s5 + $0x28] sm:$0xff]
        %v593 = vld [vmem:[%s5 + $0x30] sm:$0xff]
        %v594 = vld [vmem:[%s5 + $0x38] sm:$0xff]
        %v595 = vld [vmem:[%s5 + $0x40] sm:$0xff]
        %v596 = vld [vmem:[%s5 + $0x48] sm:$0xff]
        %v597 = vld [vmem:[%s5 + $0x50] sm:$0xff]
        %v598 = vld [vmem:[%s5 + $0x58] sm:$0xff]
        %v599 = vld [vmem:[%s5 + $0x60] sm:$0xff]
        %v600 = vld [vmem:[%s5 + $0x68] sm:$0xff]
        %v601 = vld [vmem:[%s5 + $0x70] sm:$0xff]
        %v602 = vld [vmem:[%s5 + $0x78] sm:$0xff]
        %vm603 = vcmask 64512
        %v605 = vsel %vm603, %v404, 0
        %v608 = vsel %vm603, %v587, 0
        %v611 = vsel %vm603, %v588, 0
        %v614 = vsel %vm603, %v589, 0
        %v617 = vsel %vm603, %v590, 0
        %v620 = vsel %vm603, %v591, 0
        %v623 = vsel %vm603, %v592, 0
        %v626 = vsel %vm603, %v593, 0
        %v629 = vsel %vm603, %v594, 0
        %v632 = vsel %vm603, %v595, 0
        %v635 = vsel %vm603, %v596, 0
        %v638 = vsel %vm603, %v597, 0
        %v641 = vsel %vm603, %v598, 0
        %v644 = vsel %vm603, %v599, 0
        %v647 = vsel %vm603, %v600, 0
        %v650 = vsel %vm603, %v601, 0
        %v653 = vsel %vm603, %v602, 0
        %v656 = vsel %vm603, %v496, 0
        %658 = vmatprep.subr.mxu0 0.0
        %659 = vmatpush1.xpose.msra.mxu0 %v653
        %660 = vmatprep.subr.mxu0 0.0
        %661 = vmatpush1.xpose.msra.mxu0 %v650
        %662 = vmatprep.subr.mxu0 0.0
        %663 = vmatpush1.xpose.msra.mxu0 %v647
        %664 = vmatprep.subr.mxu0 0.0
        %665 = vmatpush1.xpose.msra.mxu0 %v644
        %666 = vmatprep.subr.mxu0 0.0
        %667 = vmatpush1.xpose.msra.mxu0 %v641
        %668 = vmatprep.subr.mxu0 0.0
        %669 = vmatpush1.xpose.msra.mxu0 %v638
        %670 = vmatprep.subr.mxu0 0.0
        %671 = vmatpush1.xpose.msra.mxu0 %v635
        %672 = vmatprep.subr.mxu0 0.0
        %673 = vmatpush1.xpose.msra.mxu0 %v632
        %674 = vmatprep.subr.mxu0 0.0
        %675 = vmatpush1.xpose.msra.mxu0 %v629
        %676 = vmatprep.subr.mxu0 0.0
        %677 = vmatpush1.xpose.msra.mxu0 %v626
        %678 = vmatprep.subr.mxu0 0.0
        %679 = vmatpush1.xpose.msra.mxu0 %v623
        %680 = vmatprep.subr.mxu0 0.0
        %681 = vmatpush1.xpose.msra.mxu0 %v620
        %682 = vmatprep.subr.mxu0 0.0
        %683 = vmatpush1.xpose.msra.mxu0 %v617
        %684 = vmatprep.subr.mxu0 0.0
        %685 = vmatpush1.xpose.msra.mxu0 %v614
        %686 = vmatprep.subr.mxu0 0.0
        %687 = vmatpush1.xpose.msra.mxu0 %v611
        %688 = vmatprep.subr.mxu0 0.0
        %689 = vmatpush1.xpose.msra.mxu0 %v608
        %690 = vmatprep.subr.mxu0 0.0
        %691 = vmatpush2.xpose.msra.mxu0 0.0
        %692 = vmatprep.subr.mxu0 0.0
        %693 = vmatpush2.xpose.msra.mxu0 0.0
        %694 = vmatprep.subr.mxu0 0.0
        %695 = vmatpush2.xpose.msra.mxu0 0.0
        %696 = vmatprep.subr.mxu0 0.0
        %697 = vmatpush2.xpose.msra.mxu0 0.0
        %698 = vmatprep.subr.mxu0 0.0
        %699 = vmatpush2.xpose.msra.mxu0 0.0
        %700 = vmatprep.subr.mxu0 0.0
        %701 = vmatpush2.xpose.msra.mxu0 0.0
        %702 = vmatprep.subr.mxu0 0.0
        %703 = vmatpush2.xpose.msra.mxu0 0.0
        %704 = vmatprep.subr.mxu0 0.0
        %705 = vmatpush2.xpose.msra.mxu0 0.0
        %706 = vmatprep.subr.mxu0 0.0
        %707 = vmatpush2.xpose.msra.mxu0 0.0
        %708 = vmatprep.subr.mxu0 0.0
        %709 = vmatpush2.xpose.msra.mxu0 0.0
        %710 = vmatprep.subr.mxu0 0.0
        %711 = vmatpush2.xpose.msra.mxu0 0.0
        %712 = vmatprep.subr.mxu0 0.0
        %713 = vmatpush2.xpose.msra.mxu0 0.0
        %714 = vmatprep.subr.mxu0 0.0
        %715 = vmatpush2.xpose.msra.mxu0 0.0
        %716 = vmatprep.subr.mxu0 0.0
        %717 = vmatpush2.xpose.msra.mxu0 0.0
        %718 = vmatprep.subr.mxu0 0.0
        %719 = vmatpush2.xpose.msra.mxu0 0.0
        %720 = vmatprep.subr.mxu0 0.0
        %721 = vmatpush2.xpose.msra.mxu0 %v656
        %722 = vmatprep.mubr.f32.mxu0 0.0
        %723 = vmatmul.mubr.f32.gmra.mxu0 %v605
        %v724 = vpop.f32.mrf.mxu0
        %v725 = vadd.f32 0.0, %v724
        %v726 = vpop.f32.mrf.mxu0
        %v727 = vadd.f32 0.0, %v726
        %728 = vdwg.mxu0
        %v729 = vlaneseq
        %v730 = vshrl.u32 %v729, 7
        %v731 = vlaneseq
        %v732 = vand.u32 %v731, 127
        %v733 = vsub.s32 %v732, %v730
        %v734 = vadd.s32 %v733, 7
        %vm735 = vcmp.lt.s32.totalorder %v734, 0
        %v736 = vadd.s32 %v734, 128
        %v737 = vsel %vm735, %v736, %v734
        %738 = vset.pattern.permute.xlu0 %v737
        %739 = vperm.xlu0 %738, %v725
        %v740 = vpop.permute.xlu0 %739
        %v741 = vadd.f32 %v727, %v740
        %v742 = vsel %vm603, %v741, -inf
        %743 = vmax.xlane.f32.xlu0 %v742
        %v744 = vpop.xlane.xlu0 %743
        %v745 = vsub.f32 %v741, %v744
        %v746 = vmul.f32 %v745, 1.442695
        %v747 = vpow.pop %v746
        %v748 = vsel %vm603, %v747, 0.0
        %749 = vadd.xlane.f32.xlu0 %v748
        %v750 = vpop.xlane.xlu0 %749
        %v751 = vrcp.pop %v750
        %v752 = vmul.f32 %v747, %v751
        %v754 = vsel %vm603, %v752, 0
        %756 = vmatprep.subr.mxu0 0.0
        %757 = vmatpush1.msra.mxu0 0.0
        %758 = vmatprep.subr.mxu0 0.0
        %759 = vmatpush1.msra.mxu0 0.0
        %760 = vmatprep.subr.mxu0 0.0
        %761 = vmatpush1.msra.mxu0 0.0
        %762 = vmatprep.subr.mxu0 0.0
        %763 = vmatpush1.msra.mxu0 0.0
        %764 = vmatprep.subr.mxu0 0.0
        %765 = vmatpush1.msra.mxu0 0.0
        %766 = vmatprep.subr.mxu0 0.0
        %767 = vmatpush1.msra.mxu0 0.0
        %768 = vmatprep.subr.mxu0 0.0
        %769 = vmatpush1.msra.mxu0 0.0
        %770 = vmatprep.subr.mxu0 0.0
        %771 = vmatpush1.msra.mxu0 0.0
        %772 = vmatprep.subr.mxu0 0.0
        %773 = vmatpush1.msra.mxu0 0.0
        %774 = vmatprep.subr.mxu0 0.0
        %775 = vmatpush1.msra.mxu0 0.0
        %776 = vmatprep.subr.mxu0 0.0
        %777 = vmatpush1.msra.mxu0 0.0
        %778 = vmatprep.subr.mxu0 0.0
        %779 = vmatpush1.msra.mxu0 0.0
        %780 = vmatprep.subr.mxu0 0.0
        %781 = vmatpush1.msra.mxu0 0.0
        %782 = vmatprep.subr.mxu0 0.0
        %783 = vmatpush1.msra.mxu0 0.0
        %784 = vmatprep.subr.mxu0 0.0
        %785 = vmatpush1.msra.mxu0 0.0
        %786 = vmatprep.subr.mxu0 0.0
        %787 = vmatpush1.msra.mxu0 %v584
        %788 = vmatprep.subr.mxu0 0.0
        %789 = vmatpush2.msra.mxu0 0.0
        %790 = vmatprep.subr.mxu0 0.0
        %791 = vmatpush2.msra.mxu0 0.0
        %792 = vmatprep.subr.mxu0 0.0
        %793 = vmatpush2.msra.mxu0 0.0
        %794 = vmatprep.subr.mxu0 0.0
        %795 = vmatpush2.msra.mxu0 0.0
        %796 = vmatprep.subr.mxu0 0.0
        %797 = vmatpush2.msra.mxu0 0.0
        %798 = vmatprep.subr.mxu0 0.0
        %799 = vmatpush2.msra.mxu0 0.0
        %800 = vmatprep.subr.mxu0 0.0
        %801 = vmatpush2.msra.mxu0 0.0
        %802 = vmatprep.subr.mxu0 0.0
        %803 = vmatpush2.msra.mxu0 0.0
        %804 = vmatprep.subr.mxu0 0.0
        %805 = vmatpush2.msra.mxu0 0.0
        %806 = vmatprep.subr.mxu0 0.0
        %807 = vmatpush2.msra.mxu0 0.0
        %808 = vmatprep.subr.mxu0 0.0
        %809 = vmatpush2.msra.mxu0 0.0
        %810 = vmatprep.subr.mxu0 0.0
        %811 = vmatpush2.msra.mxu0 0.0
        %812 = vmatprep.subr.mxu0 0.0
        %813 = vmatpush2.msra.mxu0 0.0
        %814 = vmatprep.subr.mxu0 0.0
        %815 = vmatpush2.msra.mxu0 0.0
        %816 = vmatprep.subr.mxu0 0.0
        %817 = vmatpush2.msra.mxu0 0.0
        %818 = vmatprep.subr.mxu0 0.0
        %819 = vmatpush2.msra.mxu0 0.0
        %820 = vmatprep.mubr.f32.mxu0 0.0
        %821 = vmatmul.mubr.f32.gmra.mxu0 %v754
        %v822 = vpop.f32.mrf.mxu0
        %v823 = vadd.f32 0.0, %v822
        %v824 = vpop.f32.mrf.mxu0
        %825 = vdwg.mxu0
        %826 = vst.msk [vmem:[%s306] sm:$0xff] %vm603, %v752
        %s827 = scalar_lea.vmem %s5, 128
        %v828 = vld [vmem:[%s827] sm:$0xff]
        %v829 = vld [vmem:[%s827 + $0x8] sm:$0xff]
        %v830 = vld [vmem:[%s827 + $0x10] sm:$0xff]
        %v831 = vld [vmem:[%s827 + $0x18] sm:$0xff]
        %v832 = vld [vmem:[%s827 + $0x20] sm:$0xff]
        %v833 = vld [vmem:[%s827 + $0x28] sm:$0xff]
        %v834 = vld [vmem:[%s827 + $0x30] sm:$0xff]
        %v835 = vld [vmem:[%s827 + $0x38] sm:$0xff]
        %v836 = vld [vmem:[%s827 + $0x40] sm:$0xff]
        %v837 = vld [vmem:[%s827 + $0x48] sm:$0xff]
        %v838 = vld [vmem:[%s827 + $0x50] sm:$0xff]
        %v839 = vld [vmem:[%s827 + $0x58] sm:$0xff]
        %v840 = vld [vmem:[%s827 + $0x60] sm:$0xff]
        %v841 = vld [vmem:[%s827 + $0x68] sm:$0xff]
        %v842 = vld [vmem:[%s827 + $0x70] sm:$0xff]
        %v843 = vld [vmem:[%s827 + $0x78] sm:$0xff]
        %844 = vrot.lane.b32.xlu0 %v496, 120
        %v845 = vpop.permute.xlu0 %844
        %846 = vrot.lane.b32.xlu0 %v404, 120
        %v847 = vpop.permute.xlu0 %846
        %v848 = vsel %vm603, %v847, 0
        %v851 = vsel %vm603, %v828, 0
        %v854 = vsel %vm603, %v829, 0
        %v857 = vsel %vm603, %v830, 0
        %v860 = vsel %vm603, %v831, 0
        %v863 = vsel %vm603, %v832, 0
        %v866 = vsel %vm603, %v833, 0
        %v869 = vsel %vm603, %v834, 0
        %v872 = vsel %vm603, %v835, 0
        %v875 = vsel %vm603, %v836, 0
        %v878 = vsel %vm603, %v837, 0
        %v881 = vsel %vm603, %v838, 0
        %v884 = vsel %vm603, %v839, 0
        %v887 = vsel %vm603, %v840, 0
        %v890 = vsel %vm603, %v841, 0
        %v893 = vsel %vm603, %v842, 0
        %v896 = vsel %vm603, %v843, 0
        %v898 = vsel %vm603, %v845, 0
        %900 = vmatprep.subr.mxu0 0.0
        %901 = vmatpush1.xpose.msra.mxu0 %v896
        %902 = vmatprep.subr.mxu0 0.0
        %903 = vmatpush1.xpose.msra.mxu0 %v893
        %904 = vmatprep.subr.mxu0 0.0
        %905 = vmatpush1.xpose.msra.mxu0 %v890
        %906 = vmatprep.subr.mxu0 0.0
        %907 = vmatpush1.xpose.msra.mxu0 %v887
        %908 = vmatprep.subr.mxu0 0.0
        %909 = vmatpush1.xpose.msra.mxu0 %v884
        %910 = vmatprep.subr.mxu0 0.0
        %911 = vmatpush1.xpose.msra.mxu0 %v881
        %912 = vmatprep.subr.mxu0 0.0
        %913 = vmatpush1.xpose.msra.mxu0 %v878
        %914 = vmatprep.subr.mxu0 0.0
        %915 = vmatpush1.xpose.msra.mxu0 %v875
        %916 = vmatprep.subr.mxu0 0.0
        %917 = vmatpush1.xpose.msra.mxu0 %v872
        %918 = vmatprep.subr.mxu0 0.0
        %919 = vmatpush1.xpose.msra.mxu0 %v869
        %920 = vmatprep.subr.mxu0 0.0
        %921 = vmatpush1.xpose.msra.mxu0 %v866
        %922 = vmatprep.subr.mxu0 0.0
        %923 = vmatpush1.xpose.msra.mxu0 %v863
        %924 = vmatprep.subr.mxu0 0.0
        %925 = vmatpush1.xpose.msra.mxu0 %v860
        %926 = vmatprep.subr.mxu0 0.0
        %927 = vmatpush1.xpose.msra.mxu0 %v857
        %928 = vmatprep.subr.mxu0 0.0
        %929 = vmatpush1.xpose.msra.mxu0 %v854
        %930 = vmatprep.subr.mxu0 0.0
        %931 = vmatpush1.xpose.msra.mxu0 %v851
        %932 = vmatprep.subr.mxu0 0.0
        %933 = vmatpush2.xpose.msra.mxu0 0.0
        %934 = vmatprep.subr.mxu0 0.0
        %935 = vmatpush2.xpose.msra.mxu0 0.0
        %936 = vmatprep.subr.mxu0 0.0
        %937 = vmatpush2.xpose.msra.mxu0 0.0
        %938 = vmatprep.subr.mxu0 0.0
        %939 = vmatpush2.xpose.msra.mxu0 0.0
        %940 = vmatprep.subr.mxu0 0.0
        %941 = vmatpush2.xpose.msra.mxu0 0.0
        %942 = vmatprep.subr.mxu0 0.0
        %943 = vmatpush2.xpose.msra.mxu0 0.0
        %944 = vmatprep.subr.mxu0 0.0
        %945 = vmatpush2.xpose.msra.mxu0 0.0
        %946 = vmatprep.subr.mxu0 0.0
        %947 = vmatpush2.xpose.msra.mxu0 0.0
        %948 = vmatprep.subr.mxu0 0.0
        %949 = vmatpush2.xpose.msra.mxu0 0.0
        %950 = vmatprep.subr.mxu0 0.0
        %951 = vmatpush2.xpose.msra.mxu0 0.0
        %952 = vmatprep.subr.mxu0 0.0
        %953 = vmatpush2.xpose.msra.mxu0 0.0
        %954 = vmatprep.subr.mxu0 0.0
        %955 = vmatpush2.xpose.msra.mxu0 0.0
        %956 = vmatprep.subr.mxu0 0.0
        %957 = vmatpush2.xpose.msra.mxu0 0.0
        %958 = vmatprep.subr.mxu0 0.0
        %959 = vmatpush2.xpose.msra.mxu0 0.0
        %960 = vmatprep.subr.mxu0 0.0
        %961 = vmatpush2.xpose.msra.mxu0 0.0
        %962 = vmatprep.subr.mxu0 0.0
        %963 = vmatpush2.xpose.msra.mxu0 %v898
        %964 = vmatprep.mubr.f32.mxu0 0.0
        %965 = vmatmul.mubr.f32.gmra.mxu0 %v848
        %v966 = vpop.f32.mrf.mxu0
        %v967 = vadd.f32 0.0, %v966
        %v968 = vpop.f32.mrf.mxu0
        %v969 = vadd.f32 0.0, %v968
        %970 = vdwg.mxu0
        %971 = vset.pattern.permute.xlu0 %v737
        %972 = vperm.xlu0 %971, %v967
        %v973 = vpop.permute.xlu0 %972
        %v974 = vadd.f32 %v969, %v973
        %v975 = vsel %vm603, %v974, -inf
        %976 = vmax.xlane.f32.xlu0 %v975
        %v977 = vpop.xlane.xlu0 %976
        %v978 = vsub.f32 %v974, %v977
        %v979 = vmul.f32 %v978, 1.442695
        %v980 = vpow.pop %v979
        %v981 = vsel %vm603, %v980, 0.0
        %982 = vadd.xlane.f32.xlu0 %v981
        %v983 = vpop.xlane.xlu0 %982
        %v984 = vrcp.pop %v983
        %v985 = vmul.f32 %v980, %v984
        %987 = vrot.lane.b32.xlu0 %v584, 120
        %v988 = vpop.permute.xlu0 %987
        %v991 = vsel %vm603, %v985, 0
        %993 = vmatprep.subr.mxu0 0.0
        %994 = vmatpush1.msra.mxu0 0.0
        %995 = vmatprep.subr.mxu0 0.0
        %996 = vmatpush1.msra.mxu0 0.0
        %997 = vmatprep.subr.mxu0 0.0
        %998 = vmatpush1.msra.mxu0 0.0
        %999 = vmatprep.subr.mxu0 0.0
        %1000 = vmatpush1.msra.mxu0 0.0
        %1001 = vmatprep.subr.mxu0 0.0
        %1002 = vmatpush1.msra.mxu0 0.0
        %1003 = vmatprep.subr.mxu0 0.0
        %1004 = vmatpush1.msra.mxu0 0.0
        %1005 = vmatprep.subr.mxu0 0.0
        %1006 = vmatpush1.msra.mxu0 0.0
        %1007 = vmatprep.subr.mxu0 0.0
        %1008 = vmatpush1.msra.mxu0 0.0
        %1009 = vmatprep.subr.mxu0 0.0
        %1010 = vmatpush1.msra.mxu0 0.0
        %1011 = vmatprep.subr.mxu0 0.0
        %1012 = vmatpush1.msra.mxu0 0.0
        %1013 = vmatprep.subr.mxu0 0.0
        %1014 = vmatpush1.msra.mxu0 0.0
        %1015 = vmatprep.subr.mxu0 0.0
        %1016 = vmatpush1.msra.mxu0 0.0
        %1017 = vmatprep.subr.mxu0 0.0
        %1018 = vmatpush1.msra.mxu0 0.0
        %1019 = vmatprep.subr.mxu0 0.0
        %1020 = vmatpush1.msra.mxu0 0.0
        %1021 = vmatprep.subr.mxu0 0.0
        %1022 = vmatpush1.msra.mxu0 0.0
        %1023 = vmatprep.subr.mxu0 0.0
        %1024 = vmatpush1.msra.mxu0 %v988
        %1025 = vmatprep.subr.mxu0 0.0
        %1026 = vmatpush2.msra.mxu0 0.0
        %1027 = vmatprep.subr.mxu0 0.0
        %1028 = vmatpush2.msra.mxu0 0.0
        %1029 = vmatprep.subr.mxu0 0.0
        %1030 = vmatpush2.msra.mxu0 0.0
        %1031 = vmatprep.subr.mxu0 0.0
        %1032 = vmatpush2.msra.mxu0 0.0
        %1033 = vmatprep.subr.mxu0 0.0
        %1034 = vmatpush2.msra.mxu0 0.0
        %1035 = vmatprep.subr.mxu0 0.0
        %1036 = vmatpush2.msra.mxu0 0.0
        %1037 = vmatprep.subr.mxu0 0.0
        %1038 = vmatpush2.msra.mxu0 0.0
        %1039 = vmatprep.subr.mxu0 0.0
        %1040 = vmatpush2.msra.mxu0 0.0
        %1041 = vmatprep.subr.mxu0 0.0
        %1042 = vmatpush2.msra.mxu0 0.0
        %1043 = vmatprep.subr.mxu0 0.0
        %1044 = vmatpush2.msra.mxu0 0.0
        %1045 = vmatprep.subr.mxu0 0.0
        %1046 = vmatpush2.msra.mxu0 0.0
        %1047 = vmatprep.subr.mxu0 0.0
        %1048 = vmatpush2.msra.mxu0 0.0
        %1049 = vmatprep.subr.mxu0 0.0
        %1050 = vmatpush2.msra.mxu0 0.0
        %1051 = vmatprep.subr.mxu0 0.0
        %1052 = vmatpush2.msra.mxu0 0.0
        %1053 = vmatprep.subr.mxu0 0.0
        %1054 = vmatpush2.msra.mxu0 0.0
        %1055 = vmatprep.subr.mxu0 0.0
        %1056 = vmatpush2.msra.mxu0 0.0
        %1057 = vmatprep.mubr.f32.mxu0 0.0
        %1058 = vmatmul.mubr.f32.gmra.mxu0 %v991
        %v1059 = vpop.f32.mrf.mxu0
        %v1060 = vadd.f32 0.0, %v1059
        %v1061 = vpop.f32.mrf.mxu0
        %1062 = vdwg.mxu0
        %s1063 = scalar_lea.vmem %s306, 8 [#allocation4]
        %1064 = vst.msk [vmem:[%s1063] sm:$0xff] %vm603, %v985
        %s1065 = scalar_lea.vmem %s5, 256
        %v1066 = vld [vmem:[%s1065] sm:$0xff]
        %v1067 = vld [vmem:[%s1065 + $0x8] sm:$0xff]
        %v1068 = vld [vmem:[%s1065 + $0x10] sm:$0xff]
        %v1069 = vld [vmem:[%s1065 + $0x18] sm:$0xff]
        %v1070 = vld [vmem:[%s1065 + $0x20] sm:$0xff]
        %v1071 = vld [vmem:[%s1065 + $0x28] sm:$0xff]
        %v1072 = vld [vmem:[%s1065 + $0x30] sm:$0xff]
        %v1073 = vld [vmem:[%s1065 + $0x38] sm:$0xff]
        %v1074 = vld [vmem:[%s1065 + $0x40] sm:$0xff]
        %v1075 = vld [vmem:[%s1065 + $0x48] sm:$0xff]
        %v1076 = vld [vmem:[%s1065 + $0x50] sm:$0xff]
        %v1077 = vld [vmem:[%s1065 + $0x58] sm:$0xff]
        %v1078 = vld [vmem:[%s1065 + $0x60] sm:$0xff]
        %v1079 = vld [vmem:[%s1065 + $0x68] sm:$0xff]
        %v1080 = vld [vmem:[%s1065 + $0x70] sm:$0xff]
        %v1081 = vld [vmem:[%s1065 + $0x78] sm:$0xff]
        %1082 = vrot.lane.b32.xlu0 %v496, 112
        %v1083 = vpop.permute.xlu0 %1082
        %1084 = vrot.lane.b32.xlu0 %v404, 112
        %v1085 = vpop.permute.xlu0 %1084
        %v1086 = vsel %vm603, %v1085, 0
        %v1089 = vsel %vm603, %v1066, 0
        %v1092 = vsel %vm603, %v1067, 0
        %v1095 = vsel %vm603, %v1068, 0
        %v1098 = vsel %vm603, %v1069, 0
        %v1101 = vsel %vm603, %v1070, 0
        %v1104 = vsel %vm603, %v1071, 0
        %v1107 = vsel %vm603, %v1072, 0
        %v1110 = vsel %vm603, %v1073, 0
        %v1113 = vsel %vm603, %v1074, 0
        %v1116 = vsel %vm603, %v1075, 0
        %v1119 = vsel %vm603, %v1076, 0
        %v1122 = vsel %vm603, %v1077, 0
        %v1125 = vsel %vm603, %v1078, 0
        %v1128 = vsel %vm603, %v1079, 0
        %v1131 = vsel %vm603, %v1080, 0
        %v1134 = vsel %vm603, %v1081, 0
        %v1136 = vsel %vm603, %v1083, 0
        %1138 = vmatprep.subr.mxu0 0.0
        %1139 = vmatpush1.xpose.msra.mxu0 %v1134
        %1140 = vmatprep.subr.mxu0 0.0
        %1141 = vmatpush1.xpose.msra.mxu0 %v1131
        %1142 = vmatprep.subr.mxu0 0.0
        %1143 = vmatpush1.xpose.msra.mxu0 %v1128
        %1144 = vmatprep.subr.mxu0 0.0
        %1145 = vmatpush1.xpose.msra.mxu0 %v1125
        %1146 = vmatprep.subr.mxu0 0.0
        %1147 = vmatpush1.xpose.msra.mxu0 %v1122
        %1148 = vmatprep.subr.mxu0 0.0
        %1149 = vmatpush1.xpose.msra.mxu0 %v1119
        %1150 = vmatprep.subr.mxu0 0.0
        %1151 = vmatpush1.xpose.msra.mxu0 %v1116
        %1152 = vmatprep.subr.mxu0 0.0
        %1153 = vmatpush1.xpose.msra.mxu0 %v1113
        %1154 = vmatprep.subr.mxu0 0.0
        %1155 = vmatpush1.xpose.msra.mxu0 %v1110
        %1156 = vmatprep.subr.mxu0 0.0
        %1157 = vmatpush1.xpose.msra.mxu0 %v1107
        %1158 = vmatprep.subr.mxu0 0.0
        %1159 = vmatpush1.xpose.msra.mxu0 %v1104
        %1160 = vmatprep.subr.mxu0 0.0
        %1161 = vmatpush1.xpose.msra.mxu0 %v1101
        %1162 = vmatprep.subr.mxu0 0.0
        %1163 = vmatpush1.xpose.msra.mxu0 %v1098
        %1164 = vmatprep.subr.mxu0 0.0
        %1165 = vmatpush1.xpose.msra.mxu0 %v1095
        %1166 = vmatprep.subr.mxu0 0.0
        %1167 = vmatpush1.xpose.msra.mxu0 %v1092
        %1168 = vmatprep.subr.mxu0 0.0
        %1169 = vmatpush1.xpose.msra.mxu0 %v1089
        %1170 = vmatprep.subr.mxu0 0.0
        %1171 = vmatpush2.xpose.msra.mxu0 0.0
        %1172 = vmatprep.subr.mxu0 0.0
        %1173 = vmatpush2.xpose.msra.mxu0 0.0
        %1174 = vmatprep.subr.mxu0 0.0
        %1175 = vmatpush2.xpose.msra.mxu0 0.0
        %1176 = vmatprep.subr.mxu0 0.0
        %1177 = vmatpush2.xpose.msra.mxu0 0.0
        %1178 = vmatprep.subr.mxu0 0.0
        %1179 = vmatpush2.xpose.msra.mxu0 0.0
        %1180 = vmatprep.subr.mxu0 0.0
        %1181 = vmatpush2.xpose.msra.mxu0 0.0
        %1182 = vmatprep.subr.mxu0 0.0
        %1183 = vmatpush2.xpose.msra.mxu0 0.0
        %1184 = vmatprep.subr.mxu0 0.0
        %1185 = vmatpush2.xpose.msra.mxu0 0.0
        %1186 = vmatprep.subr.mxu0 0.0
        %1187 = vmatpush2.xpose.msra.mxu0 0.0
        %1188 = vmatprep.subr.mxu0 0.0
        %1189 = vmatpush2.xpose.msra.mxu0 0.0
        %1190 = vmatprep.subr.mxu0 0.0
        %1191 = vmatpush2.xpose.msra.mxu0 0.0
        %1192 = vmatprep.subr.mxu0 0.0
        %1193 = vmatpush2.xpose.msra.mxu0 0.0
        %1194 = vmatprep.subr.mxu0 0.0
        %1195 = vmatpush2.xpose.msra.mxu0 0.0
        %1196 = vmatprep.subr.mxu0 0.0
        %1197 = vmatpush2.xpose.msra.mxu0 0.0
        %1198 = vmatprep.subr.mxu0 0.0
        %1199 = vmatpush2.xpose.msra.mxu0 0.0
        %1200 = vmatprep.subr.mxu0 0.0
        %1201 = vmatpush2.xpose.msra.mxu0 %v1136
        %1202 = vmatprep.mubr.f32.mxu0 0.0
        %1203 = vmatmul.mubr.f32.gmra.mxu0 %v1086
        %v1204 = vpop.f32.mrf.mxu0
        %v1205 = vadd.f32 0.0, %v1204
        %v1206 = vpop.f32.mrf.mxu0
        %v1207 = vadd.f32 0.0, %v1206
        %1208 = vdwg.mxu0
        %1209 = vset.pattern.permute.xlu0 %v737
        %1210 = vperm.xlu0 %1209, %v1205
        %v1211 = vpop.permute.xlu0 %1210
        %v1212 = vadd.f32 %v1207, %v1211
        %v1213 = vsel %vm603, %v1212, -inf
        %1214 = vmax.xlane.f32.xlu0 %v1213
        %v1215 = vpop.xlane.xlu0 %1214
        %v1216 = vsub.f32 %v1212, %v1215
        %v1217 = vmul.f32 %v1216, 1.442695
        %v1218 = vpow.pop %v1217
        %v1219 = vsel %vm603, %v1218, 0.0
        %1220 = vadd.xlane.f32.xlu0 %v1219
        %v1221 = vpop.xlane.xlu0 %1220
        %v1222 = vrcp.pop %v1221
        %v1223 = vmul.f32 %v1218, %v1222
        %1224 = vrot.lane.b32.xlu0 %v584, 112
        %v1225 = vpop.permute.xlu0 %1224
        %v1228 = vsel %vm603, %v1223, 0
        %1230 = vmatprep.subr.mxu0 0.0
        %1231 = vmatpush1.msra.mxu0 0.0
        %1232 = vmatprep.subr.mxu0 0.0
        %1233 = vmatpush1.msra.mxu0 0.0
        %1234 = vmatprep.subr.mxu0 0.0
        %1235 = vmatpush1.msra.mxu0 0.0
        %1236 = vmatprep.subr.mxu0 0.0
        %1237 = vmatpush1.msra.mxu0 0.0
        %1238 = vmatprep.subr.mxu0 0.0
        %1239 = vmatpush1.msra.mxu0 0.0
        %1240 = vmatprep.subr.mxu0 0.0
        %1241 = vmatpush1.msra.mxu0 0.0
        %1242 = vmatprep.subr.mxu0 0.0
        %1243 = vmatpush1.msra.mxu0 0.0
        %1244 = vmatprep.subr.mxu0 0.0
        %1245 = vmatpush1.msra.mxu0 0.0
        %1246 = vmatprep.subr.mxu0 0.0
        %1247 = vmatpush1.msra.mxu0 0.0
        %1248 = vmatprep.subr.mxu0 0.0
        %1249 = vmatpush1.msra.mxu0 0.0
        %1250 = vmatprep.subr.mxu0 0.0
        %1251 = vmatpush1.msra.mxu0 0.0
        %1252 = vmatprep.subr.mxu0 0.0
        %1253 = vmatpush1.msra.mxu0 0.0
        %1254 = vmatprep.subr.mxu0 0.0
        %1255 = vmatpush1.msra.mxu0 0.0
        %1256 = vmatprep.subr.mxu0 0.0
        %1257 = vmatpush1.msra.mxu0 0.0
        %1258 = vmatprep.subr.mxu0 0.0
        %1259 = vmatpush1.msra.mxu0 0.0
        %1260 = vmatprep.subr.mxu0 0.0
        %1261 = vmatpush1.msra.mxu0 %v1225
        %1262 = vmatprep.subr.mxu0 0.0
        %1263 = vmatpush2.msra.mxu0 0.0
        %1264 = vmatprep.subr.mxu0 0.0
        %1265 = vmatpush2.msra.mxu0 0.0
        %1266 = vmatprep.subr.mxu0 0.0
        %1267 = vmatpush2.msra.mxu0 0.0
        %1268 = vmatprep.subr.mxu0 0.0
        %1269 = vmatpush2.msra.mxu0 0.0
        %1270 = vmatprep.subr.mxu0 0.0
        %1271 = vmatpush2.msra.mxu0 0.0
        %1272 = vmatprep.subr.mxu0 0.0
        %1273 = vmatpush2.msra.mxu0 0.0
        %1274 = vmatprep.subr.mxu0 0.0
        %1275 = vmatpush2.msra.mxu0 0.0
        %1276 = vmatprep.subr.mxu0 0.0
        %1277 = vmatpush2.msra.mxu0 0.0
        %1278 = vmatprep.subr.mxu0 0.0
        %1279 = vmatpush2.msra.mxu0 0.0
        %1280 = vmatprep.subr.mxu0 0.0
        %1281 = vmatpush2.msra.mxu0 0.0
        %1282 = vmatprep.subr.mxu0 0.0
        %1283 = vmatpush2.msra.mxu0 0.0
        %1284 = vmatprep.subr.mxu0 0.0
        %1285 = vmatpush2.msra.mxu0 0.0
        %1286 = vmatprep.subr.mxu0 0.0
        %1287 = vmatpush2.msra.mxu0 0.0
        %1288 = vmatprep.subr.mxu0 0.0
        %1289 = vmatpush2.msra.mxu0 0.0
        %1290 = vmatprep.subr.mxu0 0.0
        %1291 = vmatpush2.msra.mxu0 0.0
        %1292 = vmatprep.subr.mxu0 0.0
        %1293 = vmatpush2.msra.mxu0 0.0
        %1294 = vmatprep.mubr.f32.mxu0 0.0
        %1295 = vmatmul.mubr.f32.gmra.mxu0 %v1228
        %v1296 = vpop.f32.mrf.mxu0
        %v1297 = vadd.f32 0.0, %v1296
        %v1298 = vpop.f32.mrf.mxu0
        %1299 = vdwg.mxu0
        %s1300 = scalar_lea.vmem %s306, 16 [#allocation4]
        %1301 = vst.msk [vmem:[%s1300] sm:$0xff] %vm603, %v1223
        %s1302 = scalar_lea.vmem %s5, 384
        %v1303 = vld [vmem:[%s1302] sm:$0xff]
        %v1304 = vld [vmem:[%s1302 + $0x8] sm:$0xff]
        %v1305 = vld [vmem:[%s1302 + $0x10] sm:$0xff]
        %v1306 = vld [vmem:[%s1302 + $0x18] sm:$0xff]
        %v1307 = vld [vmem:[%s1302 + $0x20] sm:$0xff]
        %v1308 = vld [vmem:[%s1302 + $0x28] sm:$0xff]
        %v1309 = vld [vmem:[%s1302 + $0x30] sm:$0xff]
        %v1310 = vld [vmem:[%s1302 + $0x38] sm:$0xff]
        %v1311 = vld [vmem:[%s1302 + $0x40] sm:$0xff]
        %v1312 = vld [vmem:[%s1302 + $0x48] sm:$0xff]
        %v1313 = vld [vmem:[%s1302 + $0x50] sm:$0xff]
        %v1314 = vld [vmem:[%s1302 + $0x58] sm:$0xff]
        %v1315 = vld [vmem:[%s1302 + $0x60] sm:$0xff]
        %v1316 = vld [vmem:[%s1302 + $0x68] sm:$0xff]
        %v1317 = vld [vmem:[%s1302 + $0x70] sm:$0xff]
        %v1318 = vld [vmem:[%s1302 + $0x78] sm:$0xff]
        %1319 = vrot.lane.b32.xlu0 %v496, 104
        %v1320 = vpop.permute.xlu0 %1319
        %1321 = vrot.lane.b32.xlu0 %v404, 104
        %v1322 = vpop.permute.xlu0 %1321
        %v1323 = vsel %vm603, %v1322, 0
        %v1326 = vsel %vm603, %v1303, 0
        %v1329 = vsel %vm603, %v1304, 0
        %v1332 = vsel %vm603, %v1305, 0
        %v1335 = vsel %vm603, %v1306, 0
        %v1338 = vsel %vm603, %v1307, 0
        %v1341 = vsel %vm603, %v1308, 0
        %v1344 = vsel %vm603, %v1309, 0
        %v1347 = vsel %vm603, %v1310, 0
        %v1350 = vsel %vm603, %v1311, 0
        %v1353 = vsel %vm603, %v1312, 0
        %v1356 = vsel %vm603, %v1313, 0
        %v1359 = vsel %vm603, %v1314, 0
        %v1362 = vsel %vm603, %v1315, 0
        %v1365 = vsel %vm603, %v1316, 0
        %v1368 = vsel %vm603, %v1317, 0
        %v1371 = vsel %vm603, %v1318, 0
        %v1373 = vsel %vm603, %v1320, 0
        %1375 = vmatprep.subr.mxu0 0.0
        %1376 = vmatpush1.xpose.msra.mxu0 %v1371
        %1377 = vmatprep.subr.mxu0 0.0
        %1378 = vmatpush1.xpose.msra.mxu0 %v1368
        %1379 = vmatprep.subr.mxu0 0.0
        %1380 = vmatpush1.xpose.msra.mxu0 %v1365
        %1381 = vmatprep.subr.mxu0 0.0
        %1382 = vmatpush1.xpose.msra.mxu0 %v1362
        %1383 = vmatprep.subr.mxu0 0.0
        %1384 = vmatpush1.xpose.msra.mxu0 %v1359
        %1385 = vmatprep.subr.mxu0 0.0
        %1386 = vmatpush1.xpose.msra.mxu0 %v1356
        %1387 = vmatprep.subr.mxu0 0.0
        %1388 = vmatpush1.xpose.msra.mxu0 %v1353
        %1389 = vmatprep.subr.mxu0 0.0
        %1390 = vmatpush1.xpose.msra.mxu0 %v1350
        %1391 = vmatprep.subr.mxu0 0.0
        %1392 = vmatpush1.xpose.msra.mxu0 %v1347
        %1393 = vmatprep.subr.mxu0 0.0
        %1394 = vmatpush1.xpose.msra.mxu0 %v1344
        %1395 = vmatprep.subr.mxu0 0.0
        %1396 = vmatpush1.xpose.msra.mxu0 %v1341
        %1397 = vmatprep.subr.mxu0 0.0
        %1398 = vmatpush1.xpose.msra.mxu0 %v1338
        %1399 = vmatprep.subr.mxu0 0.0
        %1400 = vmatpush1.xpose.msra.mxu0 %v1335
        %1401 = vmatprep.subr.mxu0 0.0
        %1402 = vmatpush1.xpose.msra.mxu0 %v1332
        %1403 = vmatprep.subr.mxu0 0.0
        %1404 = vmatpush1.xpose.msra.mxu0 %v1329
        %1405 = vmatprep.subr.mxu0 0.0
        %1406 = vmatpush1.xpose.msra.mxu0 %v1326
        %1407 = vmatprep.subr.mxu0 0.0
        %1408 = vmatpush2.xpose.msra.mxu0 0.0
        %1409 = vmatprep.subr.mxu0 0.0
        %1410 = vmatpush2.xpose.msra.mxu0 0.0
        %1411 = vmatprep.subr.mxu0 0.0
        %1412 = vmatpush2.xpose.msra.mxu0 0.0
        %1413 = vmatprep.subr.mxu0 0.0
        %1414 = vmatpush2.xpose.msra.mxu0 0.0
        %1415 = vmatprep.subr.mxu0 0.0
        %1416 = vmatpush2.xpose.msra.mxu0 0.0
        %1417 = vmatprep.subr.mxu0 0.0
        %1418 = vmatpush2.xpose.msra.mxu0 0.0
        %1419 = vmatprep.subr.mxu0 0.0
        %1420 = vmatpush2.xpose.msra.mxu0 0.0
        %1421 = vmatprep.subr.mxu0 0.0
        %1422 = vmatpush2.xpose.msra.mxu0 0.0
        %1423 = vmatprep.subr.mxu0 0.0
        %1424 = vmatpush2.xpose.msra.mxu0 0.0
        %1425 = vmatprep.subr.mxu0 0.0
        %1426 = vmatpush2.xpose.msra.mxu0 0.0
        %1427 = vmatprep.subr.mxu0 0.0
        %1428 = vmatpush2.xpose.msra.mxu0 0.0
        %1429 = vmatprep.subr.mxu0 0.0
        %1430 = vmatpush2.xpose.msra.mxu0 0.0
        %1431 = vmatprep.subr.mxu0 0.0
        %1432 = vmatpush2.xpose.msra.mxu0 0.0
        %1433 = vmatprep.subr.mxu0 0.0
        %1434 = vmatpush2.xpose.msra.mxu0 0.0
        %1435 = vmatprep.subr.mxu0 0.0
        %1436 = vmatpush2.xpose.msra.mxu0 0.0
        %1437 = vmatprep.subr.mxu0 0.0
        %1438 = vmatpush2.xpose.msra.mxu0 %v1373
        %1439 = vmatprep.mubr.f32.mxu0 0.0
        %1440 = vmatmul.mubr.f32.gmra.mxu0 %v1323
        %v1441 = vpop.f32.mrf.mxu0
        %v1442 = vadd.f32 0.0, %v1441
        %v1443 = vpop.f32.mrf.mxu0
        %v1444 = vadd.f32 0.0, %v1443
        %1445 = vdwg.mxu0
        %1446 = vset.pattern.permute.xlu0 %v737
        %1447 = vperm.xlu0 %1446, %v1442
        %v1448 = vpop.permute.xlu0 %1447
        %v1449 = vadd.f32 %v1444, %v1448
        %v1450 = vsel %vm603, %v1449, -inf
        %1451 = vmax.xlane.f32.xlu0 %v1450
        %v1452 = vpop.xlane.xlu0 %1451
        %v1453 = vsub.f32 %v1449, %v1452
        %v1454 = vmul.f32 %v1453, 1.442695
        %v1455 = vpow.pop %v1454
        %v1456 = vsel %vm603, %v1455, 0.0
        %1457 = vadd.xlane.f32.xlu0 %v1456
        %v1458 = vpop.xlane.xlu0 %1457
        %v1459 = vrcp.pop %v1458
        %v1460 = vmul.f32 %v1455, %v1459
        %1461 = vrot.lane.b32.xlu0 %v584, 104
        %v1462 = vpop.permute.xlu0 %1461
        %v1465 = vsel %vm603, %v1460, 0
        %1467 = vmatprep.subr.mxu0 0.0
        %1468 = vmatpush1.msra.mxu0 0.0
        %1469 = vmatprep.subr.mxu0 0.0
        %1470 = vmatpush1.msra.mxu0 0.0
        %1471 = vmatprep.subr.mxu0 0.0
        %1472 = vmatpush1.msra.mxu0 0.0
        %1473 = vmatprep.subr.mxu0 0.0
        %1474 = vmatpush1.msra.mxu0 0.0
        %1475 = vmatprep.subr.mxu0 0.0
        %1476 = vmatpush1.msra.mxu0 0.0
        %1477 = vmatprep.subr.mxu0 0.0
        %1478 = vmatpush1.msra.mxu0 0.0
        %1479 = vmatprep.subr.mxu0 0.0
        %1480 = vmatpush1.msra.mxu0 0.0
        %1481 = vmatprep.subr.mxu0 0.0
        %1482 = vmatpush1.msra.mxu0 0.0
        %1483 = vmatprep.subr.mxu0 0.0
        %1484 = vmatpush1.msra.mxu0 0.0
        %1485 = vmatprep.subr.mxu0 0.0
        %1486 = vmatpush1.msra.mxu0 0.0
        %1487 = vmatprep.subr.mxu0 0.0
        %1488 = vmatpush1.msra.mxu0 0.0
        %1489 = vmatprep.subr.mxu0 0.0
        %1490 = vmatpush1.msra.mxu0 0.0
        %1491 = vmatprep.subr.mxu0 0.0
        %1492 = vmatpush1.msra.mxu0 0.0
        %1493 = vmatprep.subr.mxu0 0.0
        %1494 = vmatpush1.msra.mxu0 0.0
        %1495 = vmatprep.subr.mxu0 0.0
        %1496 = vmatpush1.msra.mxu0 0.0
        %1497 = vmatprep.subr.mxu0 0.0
        %1498 = vmatpush1.msra.mxu0 %v1462
        %1499 = vmatprep.subr.mxu0 0.0
        %1500 = vmatpush2.msra.mxu0 0.0
        %1501 = vmatprep.subr.mxu0 0.0
        %1502 = vmatpush2.msra.mxu0 0.0
        %1503 = vmatprep.subr.mxu0 0.0
        %1504 = vmatpush2.msra.mxu0 0.0
        %1505 = vmatprep.subr.mxu0 0.0
        %1506 = vmatpush2.msra.mxu0 0.0
        %1507 = vmatprep.subr.mxu0 0.0
        %1508 = vmatpush2.msra.mxu0 0.0
        %1509 = vmatprep.subr.mxu0 0.0
        %1510 = vmatpush2.msra.mxu0 0.0
        %1511 = vmatprep.subr.mxu0 0.0
        %1512 = vmatpush2.msra.mxu0 0.0
        %1513 = vmatprep.subr.mxu0 0.0
        %1514 = vmatpush2.msra.mxu0 0.0
        %1515 = vmatprep.subr.mxu0 0.0
        %1516 = vmatpush2.msra.mxu0 0.0
        %1517 = vmatprep.subr.mxu0 0.0
        %1518 = vmatpush2.msra.mxu0 0.0
        %1519 = vmatprep.subr.mxu0 0.0
        %1520 = vmatpush2.msra.mxu0 0.0
        %1521 = vmatprep.subr.mxu0 0.0
        %1522 = vmatpush2.msra.mxu0 0.0
        %1523 = vmatprep.subr.mxu0 0.0
        %1524 = vmatpush2.msra.mxu0 0.0
        %1525 = vmatprep.subr.mxu0 0.0
        %1526 = vmatpush2.msra.mxu0 0.0
        %1527 = vmatprep.subr.mxu0 0.0
        %1528 = vmatpush2.msra.mxu0 0.0
        %1529 = vmatprep.subr.mxu0 0.0
        %1530 = vmatpush2.msra.mxu0 0.0
        %1531 = vmatprep.mubr.f32.mxu0 0.0
        %1532 = vmatmul.mubr.f32.gmra.mxu0 %v1465
        %v1533 = vpop.f32.mrf.mxu0
        %v1534 = vadd.f32 0.0, %v1533
        %v1535 = vpop.f32.mrf.mxu0
        %1536 = vdwg.mxu0
        %s1537 = scalar_lea.vmem %s306, 24 [#allocation4]
        %1538 = vst.msk [vmem:[%s1537] sm:$0xff] %vm603, %v1460
        %1540 = vrot.lane.b32.xlu0 %v1060, 8
        %v1541 = vpop.permute.xlu0 %1540
        %1544 = vrot.lane.b32.xlu0 %v1297, 16
        %v1545 = vpop.permute.xlu0 %1544
        %1548 = vrot.lane.b32.xlu0 %v1534, 24
        %v1549 = vpop.permute.xlu0 %1548
        %v1551 = vsel %vm603, %v823, %v1541
        %vm1552 = vcmask 130048
        %v1553 = vsel %vm1552, %v1551, %v1545
        %vm1554 = vcmask 195584
        %v1555 = vsel %vm1554, %v1553, %v1549
        %1556 = vst.msk [vmem:[%s299] sm:$0xff] %vm333, %v1555
        %s1557 = sand.u32 %s174, 1
        %s1558 = scalar_lea.sflag [#allocation3], %s1557
        %s1559 = sand.u32 %s174, 1
        %s1560 = smul.addr %s1559, 8
        %s1561 = scalar_lea.vmem [#allocation2], %s1560
        %s1562 = sand.u32 %s200, 1
        %s1563 = scalar_lea.sflag [#allocation5], %s1562
        %s1564 = sand.u32 %s200, 1
        %s1565 = smul.addr %s1564, 32
        %s1566 = scalar_lea.vmem [#allocation4], %s1565
        // Predicated region
        $region45: #{tpu_custom_call.1} parent=43 // pred_check
          %p1567 = pneg %p184
        $region46: #{tpu_custom_call.1} parent=43 // pred_check_branch
          %1569 = sbr.rel (%p1567) target = $region48
        $region47: #{tpu_custom_call.1} parent=43 // pred_region
          %s1571 = ssub.s32 128, 128
          %1572 = vsyncadd %s1558, %s1571
          %s1573 = smul.addr %s25, 128
          %s1574 = scalar_lea.hbm %s6, %s1573
          %s1576 = sshll.u32 %s1561, 4
          %s1577 = int_to_ptr.vmem [resolvable:$true] %s1576
          %1579 = dma.vmem_to_hbm [thread:$0]  %s1577, 128, %s1574, %s1558
        $region48: #{tpu_custom_call.1} parent=43 // pred_fallthru
          _
        // Predicated region
        $region49: #{tpu_custom_call.1} parent=43 // pred_check
          %p1580 = pneg %p210
        $region50: #{tpu_custom_call.1} parent=43 // pred_check_branch
          %1582 = sbr.rel (%p1580) target = $region52
        $region51: #{tpu_custom_call.1} parent=43 // pred_region
          %s1584 = ssub.s32 512, 512
          %1585 = vsyncadd %s1563, %s1584
          %s1586 = smul.addr %s25, 4
          %s1587 = smul.addr %s1586, 128
          %s1588 = scalar_lea.hbm %s7, %s1587
          %s1589 = sshll.u32 %s1566, 4
          %s1590 = int_to_ptr.vmem [resolvable:$true] %s1589
          %1595 = dma.vmem_to_hbm [thread:$0]  %s1590, 512, %s1588, %s1563, 128, 128, 8
        $region52: #{tpu_custom_call.1} parent=43 // pred_fallthru
          _
      $region44: #{tpu_custom_call.1} parent=5 // pred_fallthru
        _
      %p1596 = scmp.le.s32.totalorder 2, %s20
      // Predicated region
      $region53: #{tpu_custom_call.1} parent=5 // pred_check
        %p1597 = pneg %p1596
      $region54: #{tpu_custom_call.1} parent=5 // pred_check_branch
        %1599 = sbr.rel (%p1597) target = $region56
      $region55: #{tpu_custom_call.1} parent=5 // pred_region
        %s1600 = ssub.s32 %s20, 2
        // Predicated region
        $region57: #{tpu_custom_call.1} parent=55 // pred_check
          %p1601 = pneg %p190
        $region58: #{tpu_custom_call.1} parent=55 // pred_check_branch
          %1603 = sbr.rel (%p1601) target = $region60
        $region59: #{tpu_custom_call.1} parent=55 // pred_region
          %s1604 = sand.u32 %s175, 1
          %s1605 = scalar_lea.sflag [#allocation3], %s1604
          %s1606 = sand.u32 %s175, 1
          %s1607 = smul.addr %s1606, 8
          %s1608 = scalar_lea.vmem [#allocation2], %s1607
          %1609 = dma.done %s1605, 128
        $region60: #{tpu_custom_call.1} parent=55 // pred_fallthru
          _
        // Predicated region
        $region61: #{tpu_custom_call.1} parent=55 // pred_check
          %p1610 = pneg %p216
        $region62: #{tpu_custom_call.1} parent=55 // pred_check_branch
          %1612 = sbr.rel (%p1610) target = $region64
        $region63: #{tpu_custom_call.1} parent=55 // pred_region
          %s1613 = sand.u32 %s201, 1
          %s1614 = scalar_lea.sflag [#allocation5], %s1613
          %s1615 = sand.u32 %s201, 1
          %s1616 = smul.addr %s1615, 32
          %s1617 = scalar_lea.vmem [#allocation4], %s1616
          %1618 = dma.done %s1614, 512
        $region64: #{tpu_custom_call.1} parent=55 // pred_fallthru
          _
      $region56: #{tpu_custom_call.1} parent=5 // pred_fallthru
        _
    $region6: #{tpu_custom_call.1} parent=1 // loop_footer
      %s24 = sadd.s32 1, %s20
    $region7: #{tpu_custom_call.1} parent=1 // loop_footer_branch
      %19 = sbr.rel target = $region3
    $region8: #{tpu_custom_call.1} parent=1 // loop_exit
      _
    %1619 = vsyncpa [#allocation3], 1
    %s1620 = scalar_lea.sflag [#allocation3], 1
    %1621 = vsyncpa %s1620, 1
    %1622 = vsyncpa [#allocation5], 1
    %s1623 = scalar_lea.sflag [#allocation5], 1
    %1624 = vsyncpa %s1623, 1

</llo_original>
